<compile_context>
chip_gen: v6e
topology: v6e:2x2x1
jax: 0.10.0
libtpu: 0.0.40
codegen_flags: <defaults>
</compile_context>

<pallas_src>
import functools

import jax
import jax.numpy as jnp
from jax.experimental import pallas as pl
from jax.experimental.pallas import tpu as pltpu


# ----------------------------------------------------------------------------
# Helpers
# ----------------------------------------------------------------------------
def _silu(x):
    # SiLU == x * sigmoid(x).  Exact division kept (vs. approx reciprocal) so
    # the kernel matches the reference bit-closely.
    return x * (1.0 / (1.0 + jnp.exp(-x)))


def _tap_masks_and_shifts(H, W):
    """Border masks + flattened-index shifts for the 9 taps of a SAME 3x3."""
    yy = jnp.repeat(jnp.arange(H), W)   # row index of flattened pixel q = y*W+x
    xx = jnp.tile(jnp.arange(W), H)     # col index
    masks, shifts = [], []
    for ky in range(3):
        for kx in range(3):
            dy, dx = ky - 1, kx - 1
            valid = ((yy + dy >= 0) & (yy + dy < H)
                     & (xx + dx >= 0) & (xx + dx < W))
            masks.append(valid.astype(jnp.float32))
            shifts.append(dy * W + dx)
    return jnp.stack(masks, axis=0), tuple(shifts)   # (9, H*W), python ints


def _preferred_grid_steps():
    """>=2 parallel grid steps on v7x (2 TensorCores/chip); 1 on single-TC
    parts (v5e/v6e) so the whole batch folds into the matmul lane axis."""
    try:
        kind = jax.devices()[0].device_kind.lower()
    except Exception:
        return 1
    return 2 if "7" in kind else 1


# ----------------------------------------------------------------------------
# Fused C3 kernel (one batch-group per grid step, lane-dense (C, lanes) layout)
# ----------------------------------------------------------------------------
def _make_c3_kernel(ch, depth, m_lane, tap_shifts, fuse_taps, shortcut):
    bf16 = jnp.bfloat16

    def kernel(x_ref, mask_ref, w01_ref, b01_ref, wb0_ref, bb0_ref,
               wb1_ref, bb1_ref, w2_ref, b2_ref, o_ref):
        # Activations stay lane-dense (C, lanes) = native NCHW flattening.
        xT = x_ref[0].astype(bf16)                   # (Cin, m_lane)
        masks = mask_ref[...]                        # (9, m_lane) per-image borders

        # bf16 MXU operands; f32 accumulation.  Weights are tiny -> cast once.
        w01 = w01_ref[...].astype(bf16)              # (2ch, Cin)
        wb0 = wb0_ref[...].astype(bf16)              # (depth, ch, ch)
        wb1 = wb1_ref[...].astype(bf16)              # (depth, ch, 9*ch)
        w2 = w2_ref[...].astype(bf16)                # (Cout, 2ch)

        # conv_0 and conv_1 fused into a single matmul over the shared input.
        h = _silu(jnp.dot(w01, xT, preferred_element_type=jnp.float32)
                  + b01_ref[...])
        x0 = h[:ch, :]                               # (ch, m_lane)
        x1 = h[ch:, :]                               # (ch, m_lane)

        # Hoist the per-tap mask broadcasts out of the depth loop (JAX does not
        # CSE broadcast_in_dim; re-emitting them per layer is VALU filler).
        masks_b = [None] * len(tap_shifts)
        for t, d in enumerate(tap_shifts):
            if d != 0:
                masks_b[t] = jnp.broadcast_to(masks[t:t + 1, :], (ch, m_lane))

        # Bottleneck chain, fully resident on-chip.
        # TODO(synk): for depth > ~4 switch to lax.fori_loop(..., unroll=2)
        # with dynamic wb0_ref[layer]/wb1_ref[layer] indexing to bound live
        # ranges (irrelevant at depth=2).
        for layer in range(depth):
            y = _silu(jnp.dot(wb0[layer], x0.astype(bf16),
                              preferred_element_type=jnp.float32)
                      + bb0_ref[layer])

            def tap(t, d, y=y):
                # In-register im2col tap: lane roll (XLU) + border mask (VPU).
                if d == 0:
                    return y                          # center tap, mask == 1
                return pltpu.roll(y, shift=(-d) % m_lane, axis=1) * masks_b[t]

            if fuse_taps:
                # Nine taps stacked along the contraction axis -> one K=9*ch
                # MXU matmul (best cadence at small channel counts).
                cols = jnp.concatenate(
                    [tap(t, d) for t, d in enumerate(tap_shifts)], axis=0)
                acc = jnp.dot(wb1[layer], cols.astype(bf16),
                              preferred_element_type=jnp.float32)
            else:
                # Large-channel path: per-tap accumulation, only one (ch, M)
                # tap live at a time (keeps VMEM flat on v7x's 64 MiB).
                acc = jnp.zeros((ch, m_lane), jnp.float32)
                for t, d in enumerate(tap_shifts):
                    acc = acc + jnp.dot(
                        wb1[layer][:, t * ch:(t + 1) * ch],
                        tap(t, d).astype(bf16),
                        preferred_element_type=jnp.float32)

            z = _silu(acc + bb1_ref[layer])
            x0 = x0 + z if shortcut else z            # Bottleneck shortcut

        # cat((x0, x1), channel) + conv_2 without materializing the concat.
        out = _silu(jnp.dot(w2[:, :ch], x0.astype(bf16),
                            preferred_element_type=jnp.float32)
                    + jnp.dot(w2[:, ch:], x1.astype(bf16),
                              preferred_element_type=jnp.float32)
                    + b2_ref[...])
        o_ref[0] = out.astype(o_ref.dtype)

    return kernel


def c3block_pallas(x_nchw, kp, *, shortcut=True, grid_steps=None):
    """x_nchw: (N, Cin, H, W) float32. kp: packed (BN-folded) kernel params."""
    N, cin, H, W = x_nchw.shape
    M = H * W
    depth, ch, _ = kp["wb0"].shape
    cout = kp["w2"].shape[0]
    assert kp["w01"].shape[1] == cin
    assert M % 128 == 0, "H*W must be a multiple of 128 for lane-dense tiles"

    # Grid: one step per TensorCore-worth of batch.  v5e/v6e (1 TC): the whole
    # batch folds into the lane axis; v7x: keep 2 parallel steps.
    g = max(1, min(N, grid_steps if grid_steps is not None
                   else _preferred_grid_steps()))
    while N % g:
        g -= 1
    npg = N // g
    m_lane = npg * M

    # Lane-dense slabs: (group, C, images_per_group * H*W).
    x3 = (x_nchw.reshape(g, npg, cin, M).transpose(0, 2, 1, 3)
          .reshape(g, cin, m_lane))
    masks, shifts = _tap_masks_and_shifts(H, W)
    masks = jnp.tile(masks, (1, npg))      # per-image border masks across lanes

    # Keep the single fused K=9*ch matmul while its im2col buffer is small;
    # otherwise per-tap accumulation (v7x 64 MiB VMEM budget).
    fuse_taps = 9 * ch * m_lane * 4 <= (8 << 20)

    # TODO(synk): for large H*W, additionally tile the lane axis across the
    # grid with a 1-row halo for the 3x3 taps, sizing tiles so
    # (input tile + tap/acc buffers + weights) * 2 (double buffering) stays
    # under ~48 MiB so the same kernel fits v7x's 64 MiB VMEM.

    flops = 2 * N * M * (cin * 2 * ch + depth * (ch * ch + 9 * ch * ch)
                         + 2 * ch * cout)
    transc = N * M * (2 * ch + depth * 2 * ch + cout)
    bytes_acc = 4 * (x3.size + N * cout * M + masks.size
                     + sum(int(v.size) for v in kp.values()))

    kern = _make_c3_kernel(ch, depth, m_lane, shifts, fuse_taps, shortcut)
    out3 = pl.pallas_call(
        kern,
        out_shape=jax.ShapeDtypeStruct((g, cout, m_lane), x_nchw.dtype),
        grid=(g,),
        in_specs=[
            pl.BlockSpec((1, cin, m_lane), lambda n: (n, 0, 0)),     # x slab
            pl.BlockSpec((9, m_lane), lambda n: (0, 0)),             # tap masks
            pl.BlockSpec(kp["w01"].shape, lambda n: (0, 0)),         # conv0|conv1 W
            pl.BlockSpec(kp["b01"].shape, lambda n: (0, 0)),
            pl.BlockSpec(kp["wb0"].shape, lambda n: (0, 0, 0)),      # bottleneck 1x1
            pl.BlockSpec(kp["bb0"].shape, lambda n: (0, 0, 0)),
            pl.BlockSpec(kp["wb1"].shape, lambda n: (0, 0, 0)),      # bottleneck 3x3
            pl.BlockSpec(kp["bb1"].shape, lambda n: (0, 0, 0)),
            pl.BlockSpec(kp["w2"].shape, lambda n: (0, 0)),          # conv2
            pl.BlockSpec(kp["b2"].shape, lambda n: (0, 0)),
        ],
        out_specs=pl.BlockSpec((1, cout, m_lane), lambda n: (n, 0, 0)),
        compiler_params=pltpu.CompilerParams(
            dimension_semantics=("parallel",),
            # <= v7x's 64 MiB physical VMEM; generous headroom at toy sizes.
            vmem_limit_bytes=48 * 1024 * 1024),
        cost_estimate=pl.CostEstimate(flops=flops, transcendentals=transc,
                                      bytes_accessed=bytes_acc),
    )(x3, masks, kp["w01"], kp["b01"], kp["wb0"], kp["bb0"],
      kp["wb1"], kp["bb1"], kp["w2"], kp["b2"])

    return (out3.reshape(g, cout, npg, M).transpose(0, 2, 1, 3)
            .reshape(N, cout, H, W))


# ----------------------------------------------------------------------------
# Parameters (deterministic synthetic init; BN folded into conv, OIHW form)
# ----------------------------------------------------------------------------
def _make_convblock_params(key, cin, cout, k, eps=1e-5):
    kw_, kg, kb, km, kv = jax.random.split(key, 5)
    w = 0.25 * jax.random.normal(kw_, (cout, cin, k, k), jnp.float32)   # OIHW
    gamma = 1.0 + 0.1 * jax.random.normal(kg, (cout,), jnp.float32)
    beta = 0.1 * jax.random.normal(kb, (cout,), jnp.float32)
    mean = 0.1 * jax.random.normal(km, (cout,), jnp.float32)
    var = 1.0 + 0.1 * jnp.abs(jax.random.normal(kv, (cout,), jnp.float32))
    scale = gamma / jnp.sqrt(var + eps)
    w_f = w * scale[:, None, None, None]
    b_f = beta - mean * scale
    return w_f, b_f                       # folded weight (OIHW), bias (cout,)


def init_c3_params(key, cin, cout, depth, expansion=0.5):
    ch = int(cout * expansion)
    keys = jax.random.split(key, 3 + 2 * depth)
    params = {
        "conv_0": _make_convblock_params(keys[0], cin, ch, 1),
        "conv_1": _make_convblock_params(keys[1], cin, ch, 1),
        "conv_2": _make_convblock_params(keys[2], 2 * ch, cout, 1),
        "bottlenecks": [],
    }
    for i in range(depth):
        params["bottlenecks"].append({
            "c0": _make_convblock_params(keys[3 + 2 * i], ch, ch, 1),
            "c1": _make_convblock_params(keys[4 + 2 * i], ch, ch, 3),
        })
    return params


def pack_c3_params(params):
    """Repack reference-form (OIHW) params into the fused-kernel layout.

    Weights stay f32 here (tiny; cast to bf16 once inside the kernel).  For
    realistic channel counts, .astype(jnp.bfloat16) the w* entries here too.
    """
    c0w, c0b = params["conv_0"]
    c1w, c1b = params["conv_1"]
    c2w, c2b = params["conv_2"]
    ch = c0w.shape[0]
    w01 = jnp.concatenate([c0w[:, :, 0, 0], c1w[:, :, 0, 0]], axis=0)  # (2ch,Cin)
    b01 = jnp.concatenate([c0b, c1b], axis=0)[:, None]                 # (2ch,1)
    wb0 = jnp.stack([bp["c0"][0][:, :, 0, 0] for bp in params["bottlenecks"]], 0)
    bb0 = jnp.stack([bp["c0"][1][:, None] for bp in params["bottlenecks"]], 0)
    # 3x3 OIHW -> (O, ky, kx, I) -> (O, 9*I); columns ordered (tap, cin) to
    # match the in-kernel tap stacking order.
    wb1 = jnp.stack(
        [jnp.transpose(bp["c1"][0], (0, 2, 3, 1)).reshape(ch, 9 * ch)
         for bp in params["bottlenecks"]], 0)
    bb1 = jnp.stack([bp["c1"][1][:, None] for bp in params["bottlenecks"]], 0)
    w2 = c2w[:, :, 0, 0]                                               # (Cout,2ch)
    b2 = c2b[:, None]
    return dict(w01=w01, b01=b01, wb0=wb0, bb0=bb0, wb1=wb1, bb1=bb1,
                w2=w2, b2=b2)


# ----------------------------------------------------------------------------
# Pure-JAX reference (NCHW).  bf16_operands=True mirrors the kernel's operand
# rounding (bf16 inputs, f32 accumulation) for a tight numerical check.
# ----------------------------------------------------------------------------
def _ref_conv_bn_silu(x, w_oihw, b, *, bf16_operands=False):
    if bf16_operands:
        x = x.astype(jnp.bfloat16)
        w_oihw = w_oihw.astype(jnp.bfloat16)
        prec = None
    else:
        prec = jax.lax.Precision.HIGHEST
    y = jax.lax.conv_general_dilated(
        x, w_oihw, window_strides=(1, 1), padding="SAME",
        dimension_numbers=("NCHW", "OIHW", "NCHW"),
        preferred_element_type=jnp.float32, precision=prec)
    return _silu(y + b[None, :, None, None])


def c3block_ref(x, params, *, shortcut=True, bf16_operands=False):
    conv = functools.partial(_ref_conv_bn_silu, bf16_operands=bf16_operands)
    x0 = conv(x, *params["conv_0"])
    for bp in params["bottlenecks"]:
        y = conv(x0, *bp["c0"])
        y = conv(y, *bp["c1"])
        x0 = x0 + y if shortcut else y
    x1 = conv(x, *params["conv_1"])
    xc = jnp.concatenate([x0, x1], axis=1)
    return conv(xc, *params["conv_2"])


# ----------------------------------------------------------------------------
if __name__ == "__main__":
    key = jax.random.PRNGKey(0)
    kx, kparam = jax.random.split(key)

    # C3Block(in_channels=16, out_channels=16, depth=2, w_mult=1, d_mult=1,
    #         shortcut=True, expansion=0.5) -> hidden _channels = 8
    N, C, H, W = 2, 16, 16, 16
    x = jax.random.normal(kx, (N, C, H, W), jnp.float32)
    params = init_c3_params(kparam, cin=C, cout=16, depth=2, expansion=0.5)
    kparams = pack_c3_params(params)

    fwd = jax.jit(functools.partial(c3block_pallas, kp=kparams, shortcut=True))
    out = jax.block_until_ready(fwd(x))
    assert out.shape == (N, 16, H, W), out.shape

    # Tight check vs. a reference with identical bf16 operand rounding, plus a
    # sanity check vs. the full-f32 (HIGHEST precision) module reference.
    ref_bf16 = c3block_ref(x, params, shortcut=True, bf16_operands=True)
    ref_f32 = c3block_ref(x, params, shortcut=True, bf16_operands=False)
    err_tight = float(jnp.max(jnp.abs(out - ref_bf16)))
    err_f32 = float(jnp.max(jnp.abs(out - ref_f32)))
    if err_tight > 1e-2 or err_f32 > 0.25:
        raise SystemExit(f"mismatch vs reference: bf16-ref err={err_tight}, "
                         f"f32-ref err={err_f32}")
    print("KERNEL_OK")
</pallas_src>

<mosaic_0001>
module attributes {stable_mosaic.version = 11 : i64} {
  func.func @kernel(%arg0: i32, %arg1: memref<1x16x512xf32, #tpu.memory_space<vmem>>, %arg2: memref<9x512xf32, #tpu.memory_space<vmem>>, %arg3: memref<16x16xf32, #tpu.memory_space<vmem>>, %arg4: memref<16x1xf32, #tpu.memory_space<vmem>>, %arg5: memref<2x8x8xf32, #tpu.memory_space<vmem>>, %arg6: memref<2x8x1xf32, #tpu.memory_space<vmem>>, %arg7: memref<2x8x72xf32, #tpu.memory_space<vmem>>, %arg8: memref<2x8x1xf32, #tpu.memory_space<vmem>>, %arg9: memref<16x16xf32, #tpu.memory_space<vmem>>, %arg10: memref<16x1xf32, #tpu.memory_space<vmem>>, %arg11: memref<1x16x512xf32, #tpu.memory_space<vmem>>) attributes {dimension_semantics = [#tpu.dimension_semantics<parallel>], iteration_bounds = array<i64: 1>, scalar_prefetch = 0 : i64, scratch_operands = 0 : i64, tpu.core_type = #tpu.core_type<tc>, window_params = [{transform_indices = @transform_0, window_bounds = array<i64: 1, 16, 512>}, {pipeline_mode = #tpu.pipeline_mode<synchronous>, transform_indices = @transform_1, window_bounds = array<i64: 9, 512>}, {pipeline_mode = #tpu.pipeline_mode<synchronous>, transform_indices = @transform_2, window_bounds = array<i64: 16, 16>}, {pipeline_mode = #tpu.pipeline_mode<synchronous>, transform_indices = @transform_3, window_bounds = array<i64: 16, 1>}, {pipeline_mode = #tpu.pipeline_mode<synchronous>, transform_indices = @transform_4, window_bounds = array<i64: 2, 8, 8>}, {pipeline_mode = #tpu.pipeline_mode<synchronous>, transform_indices = @transform_5, window_bounds = array<i64: 2, 8, 1>}, {pipeline_mode = #tpu.pipeline_mode<synchronous>, transform_indices = @transform_6, window_bounds = array<i64: 2, 8, 72>}, {pipeline_mode = #tpu.pipeline_mode<synchronous>, transform_indices = @transform_7, window_bounds = array<i64: 2, 8, 1>}, {pipeline_mode = #tpu.pipeline_mode<synchronous>, transform_indices = @transform_8, window_bounds = array<i64: 16, 16>}, {pipeline_mode = #tpu.pipeline_mode<synchronous>, transform_indices = @transform_9, window_bounds = array<i64: 16, 1>}, {transform_indices = @transform_10, window_bounds = array<i64: 1, 16, 512>}]} {
    %c0 = arith.constant 0 : index
    %c0_0 = arith.constant 0 : index
    %c0_1 = arith.constant 0 : index
    %0 = vector.load %arg1[%c0, %c0_0, %c0_1] : memref<1x16x512xf32, #tpu.memory_space<vmem>>, vector<1x16x512xf32>
    %1 = vector.shape_cast %0 : vector<1x16x512xf32> to vector<16x512xf32>
    %2 = arith.truncf %1 : vector<16x512xf32> to vector<16x512xbf16>
    %c0_2 = arith.constant 0 : index
    %c0_3 = arith.constant 0 : index
    %3 = vector.load %arg2[%c0_2, %c0_3] : memref<9x512xf32, #tpu.memory_space<vmem>>, vector<9x512xf32>
    %c0_4 = arith.constant 0 : index
    %c0_5 = arith.constant 0 : index
    %4 = vector.load %arg3[%c0_4, %c0_5] : memref<16x16xf32, #tpu.memory_space<vmem>>, vector<16x16xf32>
    %5 = arith.truncf %4 : vector<16x16xf32> to vector<16x16xbf16>
    %c0_6 = arith.constant 0 : index
    %c0_7 = arith.constant 0 : index
    %c0_8 = arith.constant 0 : index
    %6 = vector.load %arg5[%c0_6, %c0_7, %c0_8] : memref<2x8x8xf32, #tpu.memory_space<vmem>>, vector<2x8x8xf32>
    %7 = arith.truncf %6 : vector<2x8x8xf32> to vector<2x8x8xbf16>
    %c0_9 = arith.constant 0 : index
    %c0_10 = arith.constant 0 : index
    %c0_11 = arith.constant 0 : index
    %8 = vector.load %arg7[%c0_9, %c0_10, %c0_11] : memref<2x8x72xf32, #tpu.memory_space<vmem>>, vector<2x8x72xf32>
    %9 = arith.truncf %8 : vector<2x8x72xf32> to vector<2x8x72xbf16>
    %c0_12 = arith.constant 0 : index
    %c0_13 = arith.constant 0 : index
    %10 = vector.load %arg9[%c0_12, %c0_13] : memref<16x16xf32, #tpu.memory_space<vmem>>, vector<16x16xf32>
    %11 = arith.truncf %10 : vector<16x16xf32> to vector<16x16xbf16>
    %cst = arith.constant dense<0.000000e+00> : vector<16x512xf32>
    %12 = tpu.matmul %5, %2, %cst {dimension_numbers = #tpu.dot_dimension_numbers<[1], [0], [0], [1], [0, 0, 1, 1], [], []>} : vector<16x16xbf16>, vector<16x512xbf16>, vector<16x512xf32> -> vector<16x512xf32>
    %c0_14 = arith.constant 0 : index
    %c0_15 = arith.constant 0 : index
    %13 = vector.load %arg4[%c0_14, %c0_15] : memref<16x1xf32, #tpu.memory_space<vmem>>, vector<16x1xf32>
    %14 = vector.broadcast %13 : vector<16x1xf32> to vector<16x512xf32>
    %15 = arith.addf %12, %14 : vector<16x512xf32>
    %cst_16 = arith.constant 0.000000e+00 : f32
    %16 = vector.broadcast %cst_16 : f32 to vector<16x512xf32>
    %17 = arith.subf %16, %15 : vector<16x512xf32>
    %18 = math.exp %17 : vector<16x512xf32>
    %cst_17 = arith.constant 1.000000e+00 : f32
    %19 = vector.broadcast %cst_17 : f32 to vector<16x512xf32>
    %20 = arith.addf %19, %18 : vector<16x512xf32>
    %cst_18 = arith.constant 1.000000e+00 : f32
    %21 = vector.broadcast %cst_18 : f32 to vector<16x512xf32>
    %22 = arith.divf %21, %20 : vector<16x512xf32>
    %23 = arith.mulf %15, %22 : vector<16x512xf32>
    %24 = vector.extract_strided_slice %23 {offsets = [0, 0], sizes = [8, 512], strides = [1, 1]} : vector<16x512xf32> to vector<8x512xf32>
    %25 = vector.extract_strided_slice %23 {offsets = [8, 0], sizes = [8, 512], strides = [1, 1]} : vector<16x512xf32> to vector<8x512xf32>
    %26 = vector.extract_strided_slice %3 {offsets = [0, 0], sizes = [1, 512], strides = [1, 1]} : vector<9x512xf32> to vector<1x512xf32>
    %27 = vector.shape_cast %26 : vector<1x512xf32> to vector<1x512xf32>
    %28 = vector.broadcast %27 : vector<1x512xf32> to vector<8x512xf32>
    %29 = vector.extract_strided_slice %3 {offsets = [1, 0], sizes = [1, 512], strides = [1, 1]} : vector<9x512xf32> to vector<1x512xf32>
    %30 = vector.shape_cast %29 : vector<1x512xf32> to vector<1x512xf32>
    %31 = vector.broadcast %30 : vector<1x512xf32> to vector<8x512xf32>
    %32 = vector.extract_strided_slice %3 {offsets = [2, 0], sizes = [1, 512], strides = [1, 1]} : vector<9x512xf32> to vector<1x512xf32>
    %33 = vector.shape_cast %32 : vector<1x512xf32> to vector<1x512xf32>
    %34 = vector.broadcast %33 : vector<1x512xf32> to vector<8x512xf32>
    %35 = vector.extract_strided_slice %3 {offsets = [3, 0], sizes = [1, 512], strides = [1, 1]} : vector<9x512xf32> to vector<1x512xf32>
    %36 = vector.shape_cast %35 : vector<1x512xf32> to vector<1x512xf32>
    %37 = vector.broadcast %36 : vector<1x512xf32> to vector<8x512xf32>
    %38 = vector.extract_strided_slice %3 {offsets = [5, 0], sizes = [1, 512], strides = [1, 1]} : vector<9x512xf32> to vector<1x512xf32>
    %39 = vector.shape_cast %38 : vector<1x512xf32> to vector<1x512xf32>
    %40 = vector.broadcast %39 : vector<1x512xf32> to vector<8x512xf32>
    %41 = vector.extract_strided_slice %3 {offsets = [6, 0], sizes = [1, 512], strides = [1, 1]} : vector<9x512xf32> to vector<1x512xf32>
    %42 = vector.shape_cast %41 : vector<1x512xf32> to vector<1x512xf32>
    %43 = vector.broadcast %42 : vector<1x512xf32> to vector<8x512xf32>
    %44 = vector.extract_strided_slice %3 {offsets = [7, 0], sizes = [1, 512], strides = [1, 1]} : vector<9x512xf32> to vector<1x512xf32>
    %45 = vector.shape_cast %44 : vector<1x512xf32> to vector<1x512xf32>
    %46 = vector.broadcast %45 : vector<1x512xf32> to vector<8x512xf32>
    %47 = vector.extract_strided_slice %3 {offsets = [8, 0], sizes = [1, 512], strides = [1, 1]} : vector<9x512xf32> to vector<1x512xf32>
    %48 = vector.shape_cast %47 : vector<1x512xf32> to vector<1x512xf32>
    %49 = vector.broadcast %48 : vector<1x512xf32> to vector<8x512xf32>
    %50 = vector.extract_strided_slice %7 {offsets = [0, 0, 0], sizes = [1, 8, 8], strides = [1, 1, 1]} : vector<2x8x8xbf16> to vector<1x8x8xbf16>
    %51 = vector.shape_cast %50 : vector<1x8x8xbf16> to vector<8x8xbf16>
    %52 = arith.truncf %24 : vector<8x512xf32> to vector<8x512xbf16>
    %cst_19 = arith.constant dense<0.000000e+00> : vector<8x512xf32>
    %53 = tpu.matmul %51, %52, %cst_19 {dimension_numbers = #tpu.dot_dimension_numbers<[1], [0], [0], [1], [0, 0, 1, 1], [], []>} : vector<8x8xbf16>, vector<8x512xbf16>, vector<8x512xf32> -> vector<8x512xf32>
    %c0_20 = arith.constant 0 : index
    %c0_21 = arith.constant 0 : index
    %c0_22 = arith.constant 0 : index
    %54 = vector.load %arg6[%c0_20, %c0_21, %c0_22] : memref<2x8x1xf32, #tpu.memory_space<vmem>>, vector<1x8x1xf32>
    %55 = vector.shape_cast %54 : vector<1x8x1xf32> to vector<8x1xf32>
    %56 = vector.broadcast %55 : vector<8x1xf32> to vector<8x512xf32>
    %57 = arith.addf %53, %56 : vector<8x512xf32>
    %cst_23 = arith.constant 0.000000e+00 : f32
    %58 = vector.broadcast %cst_23 : f32 to vector<8x512xf32>
    %59 = arith.subf %58, %57 : vector<8x512xf32>
    %60 = math.exp %59 : vector<8x512xf32>
    %cst_24 = arith.constant 1.000000e+00 : f32
    %61 = vector.broadcast %cst_24 : f32 to vector<8x512xf32>
    %62 = arith.addf %61, %60 : vector<8x512xf32>
    %cst_25 = arith.constant 1.000000e+00 : f32
    %63 = vector.broadcast %cst_25 : f32 to vector<8x512xf32>
    %64 = arith.divf %63, %62 : vector<8x512xf32>
    %65 = arith.mulf %57, %64 : vector<8x512xf32>
    %c17_i32 = arith.constant 17 : i32
    %66 = tpu.dynamic_rotate %65 by %c17_i32 dim 1 : vector<8x512xf32>, i32 -> vector<8x512xf32>
    %67 = arith.mulf %66, %28 : vector<8x512xf32>
    %c16_i32 = arith.constant 16 : i32
    %68 = tpu.dynamic_rotate %65 by %c16_i32 dim 1 : vector<8x512xf32>, i32 -> vector<8x512xf32>
    %69 = arith.mulf %68, %31 : vector<8x512xf32>
    %c15_i32 = arith.constant 15 : i32
    %70 = tpu.dynamic_rotate %65 by %c15_i32 dim 1 : vector<8x512xf32>, i32 -> vector<8x512xf32>
    %71 = arith.mulf %70, %34 : vector<8x512xf32>
    %c1_i32 = arith.constant 1 : i32
    %72 = tpu.dynamic_rotate %65 by %c1_i32 dim 1 : vector<8x512xf32>, i32 -> vector<8x512xf32>
    %73 = arith.mulf %72, %37 : vector<8x512xf32>
    %c511_i32 = arith.constant 511 : i32
    %74 = tpu.dynamic_rotate %65 by %c511_i32 dim 1 : vector<8x512xf32>, i32 -> vector<8x512xf32>
    %75 = arith.mulf %74, %40 : vector<8x512xf32>
    %c497_i32 = arith.constant 497 : i32
    %76 = tpu.dynamic_rotate %65 by %c497_i32 dim 1 : vector<8x512xf32>, i32 -> vector<8x512xf32>
    %77 = arith.mulf %76, %43 : vector<8x512xf32>
    %c496_i32 = arith.constant 496 : i32
    %78 = tpu.dynamic_rotate %65 by %c496_i32 dim 1 : vector<8x512xf32>, i32 -> vector<8x512xf32>
    %79 = arith.mulf %78, %46 : vector<8x512xf32>
    %c495_i32 = arith.constant 495 : i32
    %80 = tpu.dynamic_rotate %65 by %c495_i32 dim 1 : vector<8x512xf32>, i32 -> vector<8x512xf32>
    %81 = arith.mulf %80, %49 : vector<8x512xf32>
    %82 = tpu.concatenate %67, %69, %71, %73, %65, %75, %77, %79, %81 in 0 : vector<8x512xf32>, vector<8x512xf32>, vector<8x512xf32>, vector<8x512xf32>, vector<8x512xf32>, vector<8x512xf32>, vector<8x512xf32>, vector<8x512xf32>, vector<8x512xf32> -> vector<72x512xf32>
    %83 = vector.extract_strided_slice %9 {offsets = [0, 0, 0], sizes = [1, 8, 72], strides = [1, 1, 1]} : vector<2x8x72xbf16> to vector<1x8x72xbf16>
    %84 = vector.shape_cast %83 : vector<1x8x72xbf16> to vector<8x72xbf16>
    %85 = arith.truncf %82 : vector<72x512xf32> to vector<72x512xbf16>
    %cst_26 = arith.constant dense<0.000000e+00> : vector<8x512xf32>
    %86 = tpu.matmul %84, %85, %cst_26 {dimension_numbers = #tpu.dot_dimension_numbers<[1], [0], [0], [1], [0, 0, 1, 1], [], []>} : vector<8x72xbf16>, vector<72x512xbf16>, vector<8x512xf32> -> vector<8x512xf32>
    %c0_27 = arith.constant 0 : index
    %c0_28 = arith.constant 0 : index
    %c0_29 = arith.constant 0 : index
    %87 = vector.load %arg8[%c0_27, %c0_28, %c0_29] : memref<2x8x1xf32, #tpu.memory_space<vmem>>, vector<1x8x1xf32>
    %88 = vector.shape_cast %87 : vector<1x8x1xf32> to vector<8x1xf32>
    %89 = vector.broadcast %88 : vector<8x1xf32> to vector<8x512xf32>
    %90 = arith.addf %86, %89 : vector<8x512xf32>
    %cst_30 = arith.constant 0.000000e+00 : f32
    %91 = vector.broadcast %cst_30 : f32 to vector<8x512xf32>
    %92 = arith.subf %91, %90 : vector<8x512xf32>
    %93 = math.exp %92 : vector<8x512xf32>
    %cst_31 = arith.constant 1.000000e+00 : f32
    %94 = vector.broadcast %cst_31 : f32 to vector<8x512xf32>
    %95 = arith.addf %94, %93 : vector<8x512xf32>
    %cst_32 = arith.constant 1.000000e+00 : f32
    %96 = vector.broadcast %cst_32 : f32 to vector<8x512xf32>
    %97 = arith.divf %96, %95 : vector<8x512xf32>
    %98 = arith.mulf %90, %97 : vector<8x512xf32>
    %99 = arith.addf %24, %98 : vector<8x512xf32>
    %100 = vector.extract_strided_slice %7 {offsets = [1, 0, 0], sizes = [1, 8, 8], strides = [1, 1, 1]} : vector<2x8x8xbf16> to vector<1x8x8xbf16>
    %101 = vector.shape_cast %100 : vector<1x8x8xbf16> to vector<8x8xbf16>
    %102 = arith.truncf %99 : vector<8x512xf32> to vector<8x512xbf16>
    %cst_33 = arith.constant dense<0.000000e+00> : vector<8x512xf32>
    %103 = tpu.matmul %101, %102, %cst_33 {dimension_numbers = #tpu.dot_dimension_numbers<[1], [0], [0], [1], [0, 0, 1, 1], [], []>} : vector<8x8xbf16>, vector<8x512xbf16>, vector<8x512xf32> -> vector<8x512xf32>
    %c1 = arith.constant 1 : index
    %c0_34 = arith.constant 0 : index
    %c0_35 = arith.constant 0 : index
    %104 = vector.load %arg6[%c1, %c0_34, %c0_35] : memref<2x8x1xf32, #tpu.memory_space<vmem>>, vector<1x8x1xf32>
    %105 = vector.shape_cast %104 : vector<1x8x1xf32> to vector<8x1xf32>
    %106 = vector.broadcast %105 : vector<8x1xf32> to vector<8x512xf32>
    %107 = arith.addf %103, %106 : vector<8x512xf32>
    %cst_36 = arith.constant 0.000000e+00 : f32
    %108 = vector.broadcast %cst_36 : f32 to vector<8x512xf32>
    %109 = arith.subf %108, %107 : vector<8x512xf32>
    %110 = math.exp %109 : vector<8x512xf32>
    %cst_37 = arith.constant 1.000000e+00 : f32
    %111 = vector.broadcast %cst_37 : f32 to vector<8x512xf32>
    %112 = arith.addf %111, %110 : vector<8x512xf32>
    %cst_38 = arith.constant 1.000000e+00 : f32
    %113 = vector.broadcast %cst_38 : f32 to vector<8x512xf32>
    %114 = arith.divf %113, %112 : vector<8x512xf32>
    %115 = arith.mulf %107, %114 : vector<8x512xf32>
    %c17_i32_39 = arith.constant 17 : i32
    %116 = tpu.dynamic_rotate %115 by %c17_i32_39 dim 1 : vector<8x512xf32>, i32 -> vector<8x512xf32>
    %117 = arith.mulf %116, %28 : vector<8x512xf32>
    %c16_i32_40 = arith.constant 16 : i32
    %118 = tpu.dynamic_rotate %115 by %c16_i32_40 dim 1 : vector<8x512xf32>, i32 -> vector<8x512xf32>
    %119 = arith.mulf %118, %31 : vector<8x512xf32>
    %c15_i32_41 = arith.constant 15 : i32
    %120 = tpu.dynamic_rotate %115 by %c15_i32_41 dim 1 : vector<8x512xf32>, i32 -> vector<8x512xf32>
    %121 = arith.mulf %120, %34 : vector<8x512xf32>
    %c1_i32_42 = arith.constant 1 : i32
    %122 = tpu.dynamic_rotate %115 by %c1_i32_42 dim 1 : vector<8x512xf32>, i32 -> vector<8x512xf32>
    %123 = arith.mulf %122, %37 : vector<8x512xf32>
    %c511_i32_43 = arith.constant 511 : i32
    %124 = tpu.dynamic_rotate %115 by %c511_i32_43 dim 1 : vector<8x512xf32>, i32 -> vector<8x512xf32>
    %125 = arith.mulf %124, %40 : vector<8x512xf32>
    %c497_i32_44 = arith.constant 497 : i32
    %126 = tpu.dynamic_rotate %115 by %c497_i32_44 dim 1 : vector<8x512xf32>, i32 -> vector<8x512xf32>
    %127 = arith.mulf %126, %43 : vector<8x512xf32>
    %c496_i32_45 = arith.constant 496 : i32
    %128 = tpu.dynamic_rotate %115 by %c496_i32_45 dim 1 : vector<8x512xf32>, i32 -> vector<8x512xf32>
    %129 = arith.mulf %128, %46 : vector<8x512xf32>
    %c495_i32_46 = arith.constant 495 : i32
    %130 = tpu.dynamic_rotate %115 by %c495_i32_46 dim 1 : vector<8x512xf32>, i32 -> vector<8x512xf32>
    %131 = arith.mulf %130, %49 : vector<8x512xf32>
    %132 = tpu.concatenate %117, %119, %121, %123, %115, %125, %127, %129, %131 in 0 : vector<8x512xf32>, vector<8x512xf32>, vector<8x512xf32>, vector<8x512xf32>, vector<8x512xf32>, vector<8x512xf32>, vector<8x512xf32>, vector<8x512xf32>, vector<8x512xf32> -> vector<72x512xf32>
    %133 = vector.extract_strided_slice %9 {offsets = [1, 0, 0], sizes = [1, 8, 72], strides = [1, 1, 1]} : vector<2x8x72xbf16> to vector<1x8x72xbf16>
    %134 = vector.shape_cast %133 : vector<1x8x72xbf16> to vector<8x72xbf16>
    %135 = arith.truncf %132 : vector<72x512xf32> to vector<72x512xbf16>
    %cst_47 = arith.constant dense<0.000000e+00> : vector<8x512xf32>
    %136 = tpu.matmul %134, %135, %cst_47 {dimension_numbers = #tpu.dot_dimension_numbers<[1], [0], [0], [1], [0, 0, 1, 1], [], []>} : vector<8x72xbf16>, vector<72x512xbf16>, vector<8x512xf32> -> vector<8x512xf32>
    %c1_48 = arith.constant 1 : index
    %c0_49 = arith.constant 0 : index
    %c0_50 = arith.constant 0 : index
    %137 = vector.load %arg8[%c1_48, %c0_49, %c0_50] : memref<2x8x1xf32, #tpu.memory_space<vmem>>, vector<1x8x1xf32>
    %138 = vector.shape_cast %137 : vector<1x8x1xf32> to vector<8x1xf32>
    %139 = vector.broadcast %138 : vector<8x1xf32> to vector<8x512xf32>
    %140 = arith.addf %136, %139 : vector<8x512xf32>
    %cst_51 = arith.constant 0.000000e+00 : f32
    %141 = vector.broadcast %cst_51 : f32 to vector<8x512xf32>
    %142 = arith.subf %141, %140 : vector<8x512xf32>
    %143 = math.exp %142 : vector<8x512xf32>
    %cst_52 = arith.constant 1.000000e+00 : f32
    %144 = vector.broadcast %cst_52 : f32 to vector<8x512xf32>
    %145 = arith.addf %144, %143 : vector<8x512xf32>
    %cst_53 = arith.constant 1.000000e+00 : f32
    %146 = vector.broadcast %cst_53 : f32 to vector<8x512xf32>
    %147 = arith.divf %146, %145 : vector<8x512xf32>
    %148 = arith.mulf %140, %147 : vector<8x512xf32>
    %149 = arith.addf %99, %148 : vector<8x512xf32>
    %150 = vector.extract_strided_slice %11 {offsets = [0, 0], sizes = [16, 8], strides = [1, 1]} : vector<16x16xbf16> to vector<16x8xbf16>
    %151 = arith.truncf %149 : vector<8x512xf32> to vector<8x512xbf16>
    %cst_54 = arith.constant dense<0.000000e+00> : vector<16x512xf32>
    %152 = tpu.matmul %150, %151, %cst_54 {dimension_numbers = #tpu.dot_dimension_numbers<[1], [0], [0], [1], [0, 0, 1, 1], [], []>} : vector<16x8xbf16>, vector<8x512xbf16>, vector<16x512xf32> -> vector<16x512xf32>
    %153 = vector.extract_strided_slice %11 {offsets = [0, 8], sizes = [16, 8], strides = [1, 1]} : vector<16x16xbf16> to vector<16x8xbf16>
    %154 = arith.truncf %25 : vector<8x512xf32> to vector<8x512xbf16>
    %cst_55 = arith.constant dense<0.000000e+00> : vector<16x512xf32>
    %155 = tpu.matmul %153, %154, %cst_55 {dimension_numbers = #tpu.dot_dimension_numbers<[1], [0], [0], [1], [0, 0, 1, 1], [], []>} : vector<16x8xbf16>, vector<8x512xbf16>, vector<16x512xf32> -> vector<16x512xf32>
    %156 = arith.addf %152, %155 : vector<16x512xf32>
    %c0_56 = arith.constant 0 : index
    %c0_57 = arith.constant 0 : index
    %157 = vector.load %arg10[%c0_56, %c0_57] : memref<16x1xf32, #tpu.memory_space<vmem>>, vector<16x1xf32>
    %158 = vector.broadcast %157 : vector<16x1xf32> to vector<16x512xf32>
    %159 = arith.addf %156, %158 : vector<16x512xf32>
    %cst_58 = arith.constant 0.000000e+00 : f32
    %160 = vector.broadcast %cst_58 : f32 to vector<16x512xf32>
    %161 = arith.subf %160, %159 : vector<16x512xf32>
    %162 = math.exp %161 : vector<16x512xf32>
    %cst_59 = arith.constant 1.000000e+00 : f32
    %163 = vector.broadcast %cst_59 : f32 to vector<16x512xf32>
    %164 = arith.addf %163, %162 : vector<16x512xf32>
    %cst_60 = arith.constant 1.000000e+00 : f32
    %165 = vector.broadcast %cst_60 : f32 to vector<16x512xf32>
    %166 = arith.divf %165, %164 : vector<16x512xf32>
    %167 = arith.mulf %159, %166 : vector<16x512xf32>
    %c0_61 = arith.constant 0 : index
    %c0_62 = arith.constant 0 : index
    %c0_63 = arith.constant 0 : index
    %168 = vector.load %arg11[%c0_61, %c0_62, %c0_63] : memref<1x16x512xf32, #tpu.memory_space<vmem>>, vector<1x16x512xf32>
    %169 = vector.shape_cast %168 : vector<1x16x512xf32> to vector<16x512xf32>
    %170 = vector.shape_cast %167 : vector<16x512xf32> to vector<1x16x512xf32>
    tpu.vector_store %arg11[%c0_61, %c0_62, %c0_63], %170 {strides = array<i32>} : memref<1x16x512xf32, #tpu.memory_space<vmem>>, vector<1x16x512xf32>,
    return
  }
  func.func @transform_0(%arg0: i32) -> (i32, i32, i32) {
    %c0_i32 = arith.constant 0 : i32
    %c0_i32_0 = arith.constant 0 : i32
    %c0_i32_1 = arith.constant 0 : i32
    return %arg0, %c0_i32, %c0_i32_0 : i32, i32, i32
  }
  func.func @transform_1(%arg0: i32) -> (i32, i32) {
    %c0_i32 = arith.constant 0 : i32
    %c0_i32_0 = arith.constant 0 : i32
    %c0_i32_1 = arith.constant 0 : i32
    return %c0_i32, %c0_i32_0 : i32, i32
  }
  func.func @transform_2(%arg0: i32) -> (i32, i32) {
    %c0_i32 = arith.constant 0 : i32
    %c0_i32_0 = arith.constant 0 : i32
    %c0_i32_1 = arith.constant 0 : i32
    return %c0_i32, %c0_i32_0 : i32, i32
  }
  func.func @transform_3(%arg0: i32) -> (i32, i32) {
    %c0_i32 = arith.constant 0 : i32
    %c0_i32_0 = arith.constant 0 : i32
    %c0_i32_1 = arith.constant 0 : i32
    return %c0_i32, %c0_i32_0 : i32, i32
  }
  func.func @transform_4(%arg0: i32) -> (i32, i32, i32) {
    %c0_i32 = arith.constant 0 : i32
    %c0_i32_0 = arith.constant 0 : i32
    %c0_i32_1 = arith.constant 0 : i32
    %c0_i32_2 = arith.constant 0 : i32
    return %c0_i32, %c0_i32_0, %c0_i32_1 : i32, i32, i32
  }
  func.func @transform_5(%arg0: i32) -> (i32, i32, i32) {
    %c0_i32 = arith.constant 0 : i32
    %c0_i32_0 = arith.constant 0 : i32
    %c0_i32_1 = arith.constant 0 : i32
    %c0_i32_2 = arith.constant 0 : i32
    return %c0_i32, %c0_i32_0, %c0_i32_1 : i32, i32, i32
  }
  func.func @transform_6(%arg0: i32) -> (i32, i32, i32) {
    %c0_i32 = arith.constant 0 : i32
    %c0_i32_0 = arith.constant 0 : i32
    %c0_i32_1 = arith.constant 0 : i32
    %c0_i32_2 = arith.constant 0 : i32
    return %c0_i32, %c0_i32_0, %c0_i32_1 : i32, i32, i32
  }
  func.func @transform_7(%arg0: i32) -> (i32, i32, i32) {
    %c0_i32 = arith.constant 0 : i32
    %c0_i32_0 = arith.constant 0 : i32
    %c0_i32_1 = arith.constant 0 : i32
    %c0_i32_2 = arith.constant 0 : i32
    return %c0_i32, %c0_i32_0, %c0_i32_1 : i32, i32, i32
  }
  func.func @transform_8(%arg0: i32) -> (i32, i32) {
    %c0_i32 = arith.constant 0 : i32
    %c0_i32_0 = arith.constant 0 : i32
    %c0_i32_1 = arith.constant 0 : i32
    return %c0_i32, %c0_i32_0 : i32, i32
  }
  func.func @transform_9(%arg0: i32) -> (i32, i32) {
    %c0_i32 = arith.constant 0 : i32
    %c0_i32_0 = arith.constant 0 : i32
    %c0_i32_1 = arith.constant 0 : i32
    return %c0_i32, %c0_i32_0 : i32, i32
  }
  func.func @transform_10(%arg0: i32) -> (i32, i32, i32) {
    %c0_i32 = arith.constant 0 : i32
    %c0_i32_0 = arith.constant 0 : i32
    %c0_i32_1 = arith.constant 0 : i32
    return %arg0, %c0_i32, %c0_i32_0 : i32, i32, i32
  }
}

</mosaic_0001>

<llo_original>
// kernel: c3block_pallas.1
$region0: #{c3block_pallas.1}
  #allocation0 [shape = 'u32[]', space=smem, size = 0x4, offset = 0x4, fixed_abs, tag = 'smem constant byte address 0x4 - core index']
  #allocation1 [shape = 'u32[144,128]{1,0:T(1,128)}', space=vmem, size = 0x12000, scoped, tag = 'internal scratch']
  %s0 = inlined_call_operand.vmem [shape: f32[1,16,512], index: 0, kind: input, shape index: {}]
  %s1 = inlined_call_operand.vmem [shape: f32[9,512], index: 1, kind: input, shape index: {}]
  %s2 = inlined_call_operand.vmem [shape: f32[16,16], index: 2, kind: input, shape index: {}]
  %s3 = inlined_call_operand.vmem [shape: f32[16,1], index: 3, kind: input, shape index: {}]
  %s4 = inlined_call_operand.vmem [shape: f32[2,8,8], index: 4, kind: input, shape index: {}]
  %s5 = inlined_call_operand.vmem [shape: f32[2,8,1], index: 5, kind: input, shape index: {}]
  %s6 = inlined_call_operand.vmem [shape: f32[2,8,72], index: 6, kind: input, shape index: {}]
  %s7 = inlined_call_operand.vmem [shape: f32[2,8,1], index: 7, kind: input, shape index: {}]
  %s8 = inlined_call_operand.vmem [shape: f32[16,16], index: 8, kind: input, shape index: {}]
  %s9 = inlined_call_operand.vmem [shape: f32[16,1], index: 9, kind: input, shape index: {}]
  %s10 = inlined_call_operand.vmem [shape: f32[1,16,512], index: 10, kind: output, shape index: {}]
  %s11 = sld [smem:[#allocation0]]
  $region50: #{c3block_pallas.1} parent=0
    _
  %s13 = ssub.s32 1, %s11
  %s14 = scalar_select 0, %s13, %s11
  // Predicated region
  $region2: #{c3block_pallas.1} parent=0 // pred_check
    _
  $region3: #{c3block_pallas.1} parent=0 // pred_check_branch
    %16 = sbr.rel (0) target = $region5
  $region4: #{c3block_pallas.1} parent=0 // pred_region
    _
  $region5: #{c3block_pallas.1} parent=0 // pred_fallthru
    _
  // Predicated region
  $region6: #{c3block_pallas.1} parent=0 // pred_check
    _
  $region7: #{c3block_pallas.1} parent=0 // pred_check_branch
    %18 = sbr.rel (0) target = $region9
  $region8: #{c3block_pallas.1} parent=0 // pred_region
    _
  $region9: #{c3block_pallas.1} parent=0 // pred_fallthru
    _
  // Predicated region
  $region10: #{c3block_pallas.1} parent=0 // pred_check
    _
  $region11: #{c3block_pallas.1} parent=0 // pred_check_branch
    %20 = sbr.rel (0) target = $region13
  $region12: #{c3block_pallas.1} parent=0 // pred_region
    _
  $region13: #{c3block_pallas.1} parent=0 // pred_fallthru
    _
  // Predicated region
  $region14: #{c3block_pallas.1} parent=0 // pred_check
    _
  $region15: #{c3block_pallas.1} parent=0 // pred_check_branch
    %22 = sbr.rel (0) target = $region17
  $region16: #{c3block_pallas.1} parent=0 // pred_region
    _
  $region17: #{c3block_pallas.1} parent=0 // pred_fallthru
    _
  // Predicated region
  $region18: #{c3block_pallas.1} parent=0 // pred_check
    _
  $region19: #{c3block_pallas.1} parent=0 // pred_check_branch
    %24 = sbr.rel (0) target = $region21
  $region20: #{c3block_pallas.1} parent=0 // pred_region
    _
  $region21: #{c3block_pallas.1} parent=0 // pred_fallthru
    _
  // Predicated region
  $region22: #{c3block_pallas.1} parent=0 // pred_check
    _
  $region23: #{c3block_pallas.1} parent=0 // pred_check_branch
    %26 = sbr.rel (0) target = $region25
  $region24: #{c3block_pallas.1} parent=0 // pred_region
    _
  $region25: #{c3block_pallas.1} parent=0 // pred_fallthru
    _
  // Predicated region
  $region26: #{c3block_pallas.1} parent=0 // pred_check
    _
  $region27: #{c3block_pallas.1} parent=0 // pred_check_branch
    %28 = sbr.rel (0) target = $region29
  $region28: #{c3block_pallas.1} parent=0 // pred_region
    _
  $region29: #{c3block_pallas.1} parent=0 // pred_fallthru
    _
  // Predicated region
  $region30: #{c3block_pallas.1} parent=0 // pred_check
    _
  $region31: #{c3block_pallas.1} parent=0 // pred_check_branch
    %30 = sbr.rel (0) target = $region33
  $region32: #{c3block_pallas.1} parent=0 // pred_region
    _
  $region33: #{c3block_pallas.1} parent=0 // pred_fallthru
    _
  // Predicated region
  $region34: #{c3block_pallas.1} parent=0 // pred_check
    _
  $region35: #{c3block_pallas.1} parent=0 // pred_check_branch
    %32 = sbr.rel (0) target = $region37
  $region36: #{c3block_pallas.1} parent=0 // pred_region
    _
  $region37: #{c3block_pallas.1} parent=0 // pred_fallthru
    _
  // Predicated region
  $region38: #{c3block_pallas.1} parent=0 // pred_check
    _
  $region39: #{c3block_pallas.1} parent=0 // pred_check_branch
    %34 = sbr.rel (0) target = $region41
  $region40: #{c3block_pallas.1} parent=0 // pred_region
    _
  $region41: #{c3block_pallas.1} parent=0 // pred_fallthru
    _
  %v36 = vld [vmem:[%s0] sm:$0xff]
  %v37 = vld [vmem:[%s0 + $0x8] sm:$0xff]
  %v38 = vld [vmem:[%s0 + $0x10] sm:$0xff]
  %v39 = vld [vmem:[%s0 + $0x18] sm:$0xff]
  %v40 = vld [vmem:[%s0 + $0x20] sm:$0xff]
  %v41 = vld [vmem:[%s0 + $0x28] sm:$0xff]
  %v42 = vld [vmem:[%s0 + $0x30] sm:$0xff]
  %v43 = vld [vmem:[%s0 + $0x38] sm:$0xff]
  %v44 = vpack.c.bf16 %v40, %v36
  %v45 = vpack.c.bf16 %v41, %v37
  %v46 = vpack.c.bf16 %v42, %v38
  %v47 = vpack.c.bf16 %v43, %v39
  %v48 = vld [vmem:[%s1] sm:$0xff]
  %v49 = vld [vmem:[%s1 + $0x8] sm:$0xff]
  %v50 = vld [vmem:[%s1 + $0x10] sm:$0xff]
  %v51 = vld [vmem:[%s1 + $0x18] sm:$0xff]
  %v52 = vld [vmem:[%s1 + $0x20] sm:$0x1]
  %v53 = vld [vmem:[%s1 + $0x28] sm:$0x1]
  %v54 = vld [vmem:[%s1 + $0x30] sm:$0x1]
  %v55 = vld [vmem:[%s1 + $0x38] sm:$0x1]
  %v56 = vld [vmem:[%s2] sm:$0xff]
  %v57 = vld [vmem:[%s2 + $0x8] sm:$0xff]
  %v58 = vpack.c.bf16 %v57, %v56
  %v59 = vld [vmem:[%s4] sm:$0xff]
  %v60 = vld [vmem:[%s4 + $0x8] sm:$0xff]
  %v61 = vpack.c.bf16 %v59, %v59
  %v62 = vpack.c.bf16 %v60, %v60
  %v63 = vld [vmem:[%s6] sm:$0xff]
  %v64 = vld [vmem:[%s6 + $0x8] sm:$0xff]
  %v65 = vpack.c.bf16 %v63, %v63
  %v66 = vpack.c.bf16 %v64, %v64
  %v67 = vld [vmem:[%s8] sm:$0xff]
  %v68 = vld [vmem:[%s8 + $0x8] sm:$0xff]
  %v69 = vpack.c.bf16 %v68, %v67
  %v70 = vld [vmem:[%s3] sm:$0xff]
  %v71 = vld [vmem:[%s3 + $0x8] sm:$0xff]
  %73 = vset.pattern.permute.xlu0 0
  %74 = vperm.xlu0 %73, %v70
  %v75 = vpop.permute.xlu0 %74
  %78 = vset.pattern.permute.xlu0 0
  %79 = vperm.xlu0 %78, %v71
  %v80 = vpop.permute.xlu0 %79
  %vm82 = vcmask 130048
  %v84 = vsel %vm82, %v58, 0
  %86 = vmatprep.subr.bf16.mxu0 0
  %87 = vmatpush1.bf16.msra.mxu0 0
  %88 = vmatprep.subr.bf16.mxu0 0
  %89 = vmatpush1.bf16.msra.mxu0 0
  %90 = vmatprep.subr.bf16.mxu0 0
  %91 = vmatpush1.bf16.msra.mxu0 0
  %92 = vmatprep.subr.bf16.mxu0 0
  %93 = vmatpush1.bf16.msra.mxu0 0
  %94 = vmatprep.subr.bf16.mxu0 0
  %95 = vmatpush1.bf16.msra.mxu0 0
  %96 = vmatprep.subr.bf16.mxu0 0
  %97 = vmatpush1.bf16.msra.mxu0 0
  %98 = vmatprep.subr.bf16.mxu0 0
  %99 = vmatpush1.bf16.msra.mxu0 0
  %100 = vmatprep.subr.bf16.mxu0 %v45
  %101 = vmatpush1.bf16.msra.mxu0 %v44
  %102 = vmatprep.subr.bf16.mxu0 0
  %103 = vmatpush2.bf16.msra.mxu0 0
  %104 = vmatprep.subr.bf16.mxu0 0
  %105 = vmatpush2.bf16.msra.mxu0 0
  %106 = vmatprep.subr.bf16.mxu0 0
  %107 = vmatpush2.bf16.msra.mxu0 0
  %108 = vmatprep.subr.bf16.mxu0 0
  %109 = vmatpush2.bf16.msra.mxu0 0
  %110 = vmatprep.subr.bf16.mxu0 0
  %111 = vmatpush2.bf16.msra.mxu0 0
  %112 = vmatprep.subr.bf16.mxu0 0
  %113 = vmatpush2.bf16.msra.mxu0 0
  %114 = vmatprep.subr.bf16.mxu0 0
  %115 = vmatpush2.bf16.msra.mxu0 0
  %116 = vmatprep.subr.bf16.mxu0 0
  %117 = vmatpush2.bf16.msra.mxu0 0
  %118 = vmatprep.mubr.bf16.mxu0 0
  %119 = vmatmul.mubr.bf16.gmra.mxu0 %v84
  %v120 = vpop.f32.mrf.mxu0
  %v121 = vadd.f32 %v75, %v120
  %v122 = vpop.f32.mrf.mxu0
  %v123 = vadd.f32 %v75, %v122
  %v124 = vpop.f32.mrf.mxu0
  %v125 = vadd.f32 %v80, %v124
  %v126 = vpop.f32.mrf.mxu0
  %v127 = vadd.f32 %v80, %v126
  %128 = vdwg.mxu0
  %129 = vmatprep.subr.bf16.mxu0 0
  %130 = vmatpush1.bf16.msra.mxu0 0
  %131 = vmatprep.subr.bf16.mxu0 0
  %132 = vmatpush1.bf16.msra.mxu0 0
  %133 = vmatprep.subr.bf16.mxu0 0
  %134 = vmatpush1.bf16.msra.mxu0 0
  %135 = vmatprep.subr.bf16.mxu0 0
  %136 = vmatpush1.bf16.msra.mxu0 0
  %137 = vmatprep.subr.bf16.mxu0 0
  %138 = vmatpush1.bf16.msra.mxu0 0
  %139 = vmatprep.subr.bf16.mxu0 0
  %140 = vmatpush1.bf16.msra.mxu0 0
  %141 = vmatprep.subr.bf16.mxu0 0
  %142 = vmatpush1.bf16.msra.mxu0 0
  %143 = vmatprep.subr.bf16.mxu0 %v47
  %144 = vmatpush1.bf16.msra.mxu0 %v46
  %145 = vmatprep.subr.bf16.mxu0 0
  %146 = vmatpush2.bf16.msra.mxu0 0
  %147 = vmatprep.subr.bf16.mxu0 0
  %148 = vmatpush2.bf16.msra.mxu0 0
  %149 = vmatprep.subr.bf16.mxu0 0
  %150 = vmatpush2.bf16.msra.mxu0 0
  %151 = vmatprep.subr.bf16.mxu0 0
  %152 = vmatpush2.bf16.msra.mxu0 0
  %153 = vmatprep.subr.bf16.mxu0 0
  %154 = vmatpush2.bf16.msra.mxu0 0
  %155 = vmatprep.subr.bf16.mxu0 0
  %156 = vmatpush2.bf16.msra.mxu0 0
  %157 = vmatprep.subr.bf16.mxu0 0
  %158 = vmatpush2.bf16.msra.mxu0 0
  %159 = vmatprep.subr.bf16.mxu0 0
  %160 = vmatpush2.bf16.msra.mxu0 0
  %161 = vmatprep.mubr.bf16.mxu0 0
  %162 = vmatmul.mubr.bf16.gmra.mxu0 %v84
  %v163 = vpop.f32.mrf.mxu0
  %v164 = vadd.f32 %v75, %v163
  %v165 = vpop.f32.mrf.mxu0
  %v166 = vadd.f32 %v75, %v165
  %v167 = vpop.f32.mrf.mxu0
  %v168 = vadd.f32 %v80, %v167
  %v169 = vpop.f32.mrf.mxu0
  %v170 = vadd.f32 %v80, %v169
  %171 = vdwg.mxu0
  %v172 = vsub.f32 0.0, %v121
  %v173 = vsub.f32 0.0, %v123
  %v174 = vsub.f32 0.0, %v164
  %v175 = vsub.f32 0.0, %v166
  %v176 = vsub.f32 0.0, %v125
  %v177 = vsub.f32 0.0, %v127
  %v178 = vsub.f32 0.0, %v168
  %v179 = vsub.f32 0.0, %v170
  %v180 = vmul.f32 %v172, 1.442695
  %v181 = vpow.pop %v180
  %v182 = vmul.f32 %v173, 1.442695
  %v183 = vpow.pop %v182
  %v184 = vmul.f32 %v174, 1.442695
  %v185 = vpow.pop %v184
  %v186 = vmul.f32 %v175, 1.442695
  %v187 = vpow.pop %v186
  %v188 = vmul.f32 %v176, 1.442695
  %v189 = vpow.pop %v188
  %v190 = vmul.f32 %v177, 1.442695
  %v191 = vpow.pop %v190
  %v192 = vmul.f32 %v178, 1.442695
  %v193 = vpow.pop %v192
  %v194 = vmul.f32 %v179, 1.442695
  %v195 = vpow.pop %v194
  %v196 = vadd.f32 %v181, 1.0
  %v197 = vadd.f32 %v183, 1.0
  %v198 = vadd.f32 %v185, 1.0
  %v199 = vadd.f32 %v187, 1.0
  %v200 = vadd.f32 %v189, 1.0
  %v201 = vadd.f32 %v191, 1.0
  %v202 = vadd.f32 %v193, 1.0
  %v203 = vadd.f32 %v195, 1.0
  %v204 = vrcp.pop %v196
  %v205 = vmul.f32 1.0, %v204
  %v206 = vrcp.pop %v197
  %v207 = vmul.f32 1.0, %v206
  %v208 = vrcp.pop %v198
  %v209 = vmul.f32 1.0, %v208
  %v210 = vrcp.pop %v199
  %v211 = vmul.f32 1.0, %v210
  %v212 = vrcp.pop %v200
  %v213 = vmul.f32 1.0, %v212
  %v214 = vrcp.pop %v201
  %v215 = vmul.f32 1.0, %v214
  %v216 = vrcp.pop %v202
  %v217 = vmul.f32 1.0, %v216
  %v218 = vrcp.pop %v203
  %v219 = vmul.f32 1.0, %v218
  %v220 = vmul.f32 %v121, %v205
  %v221 = vmul.f32 %v123, %v207
  %v222 = vmul.f32 %v164, %v209
  %v223 = vmul.f32 %v166, %v211
  %v224 = vmul.f32 %v125, %v213
  %v225 = vmul.f32 %v127, %v215
  %v226 = vmul.f32 %v168, %v217
  %v227 = vmul.f32 %v170, %v219
  %v228 = vlaneseq
  %v229 = vshrl.u32 %v228, 7
  %v230 = vsub.s32 0, %v229
  %v231 = vrot.slane %v48, %v230
  %v232 = vlaneseq
  %v233 = vshrl.u32 %v232, 7
  %v234 = vsub.s32 0, %v233
  %v235 = vrot.slane %v49, %v234
  %v236 = vlaneseq
  %v237 = vshrl.u32 %v236, 7
  %v238 = vsub.s32 0, %v237
  %v239 = vrot.slane %v50, %v238
  %v240 = vlaneseq
  %v241 = vshrl.u32 %v240, 7
  %v242 = vsub.s32 0, %v241
  %v243 = vrot.slane %v51, %v242
  %v244 = vlaneseq
  %v245 = vshrl.u32 %v244, 7
  %v246 = vsub.s32 1, %v245
  %v247 = vrot.slane %v48, %v246
  %v248 = vlaneseq
  %v249 = vshrl.u32 %v248, 7
  %v250 = vsub.s32 1, %v249
  %v251 = vrot.slane %v49, %v250
  %v252 = vlaneseq
  %v253 = vshrl.u32 %v252, 7
  %v254 = vsub.s32 1, %v253
  %v255 = vrot.slane %v50, %v254
  %v256 = vlaneseq
  %v257 = vshrl.u32 %v256, 7
  %v258 = vsub.s32 1, %v257
  %v259 = vrot.slane %v51, %v258
  %v260 = vlaneseq
  %v261 = vshrl.u32 %v260, 7
  %v262 = vsub.s32 2, %v261
  %v263 = vrot.slane %v48, %v262
  %v264 = vlaneseq
  %v265 = vshrl.u32 %v264, 7
  %v266 = vsub.s32 2, %v265
  %v267 = vrot.slane %v49, %v266
  %v268 = vlaneseq
  %v269 = vshrl.u32 %v268, 7
  %v270 = vsub.s32 2, %v269
  %v271 = vrot.slane %v50, %v270
  %v272 = vlaneseq
  %v273 = vshrl.u32 %v272, 7
  %v274 = vsub.s32 2, %v273
  %v275 = vrot.slane %v51, %v274
  %v276 = vlaneseq
  %v277 = vshrl.u32 %v276, 7
  %v278 = vsub.s32 3, %v277
  %v279 = vrot.slane %v48, %v278
  %v280 = vlaneseq
  %v281 = vshrl.u32 %v280, 7
  %v282 = vsub.s32 3, %v281
  %v283 = vrot.slane %v49, %v282
  %v284 = vlaneseq
  %v285 = vshrl.u32 %v284, 7
  %v286 = vsub.s32 3, %v285
  %v287 = vrot.slane %v50, %v286
  %v288 = vlaneseq
  %v289 = vshrl.u32 %v288, 7
  %v290 = vsub.s32 3, %v289
  %v291 = vrot.slane %v51, %v290
  %v292 = vlaneseq
  %v293 = vshrl.u32 %v292, 7
  %v294 = vsub.s32 5, %v293
  %v295 = vrot.slane %v48, %v294
  %v296 = vlaneseq
  %v297 = vshrl.u32 %v296, 7
  %v298 = vsub.s32 5, %v297
  %v299 = vrot.slane %v49, %v298
  %v300 = vlaneseq
  %v301 = vshrl.u32 %v300, 7
  %v302 = vsub.s32 5, %v301
  %v303 = vrot.slane %v50, %v302
  %v304 = vlaneseq
  %v305 = vshrl.u32 %v304, 7
  %v306 = vsub.s32 5, %v305
  %v307 = vrot.slane %v51, %v306
  %v308 = vlaneseq
  %v309 = vshrl.u32 %v308, 7
  %v310 = vsub.s32 6, %v309
  %v311 = vrot.slane %v48, %v310
  %v312 = vlaneseq
  %v313 = vshrl.u32 %v312, 7
  %v314 = vsub.s32 6, %v313
  %v315 = vrot.slane %v49, %v314
  %v316 = vlaneseq
  %v317 = vshrl.u32 %v316, 7
  %v318 = vsub.s32 6, %v317
  %v319 = vrot.slane %v50, %v318
  %v320 = vlaneseq
  %v321 = vshrl.u32 %v320, 7
  %v322 = vsub.s32 6, %v321
  %v323 = vrot.slane %v51, %v322
  %v324 = vlaneseq
  %v325 = vshrl.u32 %v324, 7
  %v326 = vsub.s32 7, %v325
  %v327 = vrot.slane %v48, %v326
  %v328 = vlaneseq
  %v329 = vshrl.u32 %v328, 7
  %v330 = vsub.s32 7, %v329
  %v331 = vrot.slane %v49, %v330
  %v332 = vlaneseq
  %v333 = vshrl.u32 %v332, 7
  %v334 = vsub.s32 7, %v333
  %v335 = vrot.slane %v50, %v334
  %v336 = vlaneseq
  %v337 = vshrl.u32 %v336, 7
  %v338 = vsub.s32 7, %v337
  %v339 = vrot.slane %v51, %v338
  %v340 = vlaneseq
  %v341 = vshrl.u32 %v340, 7
  %v342 = vsub.s32 0, %v341
  %v343 = vrot.slane %v52, %v342
  %v344 = vlaneseq
  %v345 = vshrl.u32 %v344, 7
  %v346 = vsub.s32 0, %v345
  %v347 = vrot.slane %v53, %v346
  %v348 = vlaneseq
  %v349 = vshrl.u32 %v348, 7
  %v350 = vsub.s32 0, %v349
  %v351 = vrot.slane %v54, %v350
  %v352 = vlaneseq
  %v353 = vshrl.u32 %v352, 7
  %v354 = vsub.s32 0, %v353
  %v355 = vrot.slane %v55, %v354
  %v356 = vpack.c.bf16 %v220, %v220
  %v357 = vpack.c.bf16 %v221, %v221
  %v358 = vpack.c.bf16 %v222, %v222
  %v359 = vpack.c.bf16 %v223, %v223
  %v360 = vld [vmem:[%s5] sm:$0xff]
  %362 = vset.pattern.permute.xlu0 0
  %363 = vperm.xlu0 %362, %v360
  %v364 = vpop.permute.xlu0 %363
  %vm366 = vcmask 64512
  %v368 = vsel %vm366, %v61, 0
  %vm370 = vcmask 1043456
  %v372 = vsel %vm370, %v356, 0
  %v375 = vsel %vm370, %v357, 0
  %v378 = vsel %vm370, %v358, 0
  %v381 = vsel %vm370, %v359, 0
  %383 = vmatprep.subr.bf16.mxu0 0
  %384 = vmatpush1.bf16.msra.mxu0 0
  %385 = vmatprep.subr.bf16.mxu0 0
  %386 = vmatpush1.bf16.msra.mxu0 0
  %387 = vmatprep.subr.bf16.mxu0 0
  %388 = vmatpush1.bf16.msra.mxu0 0
  %389 = vmatprep.subr.bf16.mxu0 0
  %390 = vmatpush1.bf16.msra.mxu0 0
  %391 = vmatprep.subr.bf16.mxu0 0
  %392 = vmatpush1.bf16.msra.mxu0 0
  %393 = vmatprep.subr.bf16.mxu0 0
  %394 = vmatpush1.bf16.msra.mxu0 0
  %395 = vmatprep.subr.bf16.mxu0 0
  %396 = vmatpush1.bf16.msra.mxu0 0
  %397 = vmatprep.subr.bf16.mxu0 %v375
  %398 = vmatpush1.bf16.msra.mxu0 %v372
  %399 = vmatprep.subr.bf16.mxu0 0
  %400 = vmatpush2.bf16.msra.mxu0 0
  %401 = vmatprep.subr.bf16.mxu0 0
  %402 = vmatpush2.bf16.msra.mxu0 0
  %403 = vmatprep.subr.bf16.mxu0 0
  %404 = vmatpush2.bf16.msra.mxu0 0
  %405 = vmatprep.subr.bf16.mxu0 0
  %406 = vmatpush2.bf16.msra.mxu0 0
  %407 = vmatprep.subr.bf16.mxu0 0
  %408 = vmatpush2.bf16.msra.mxu0 0
  %409 = vmatprep.subr.bf16.mxu0 0
  %410 = vmatpush2.bf16.msra.mxu0 0
  %411 = vmatprep.subr.bf16.mxu0 0
  %412 = vmatpush2.bf16.msra.mxu0 0
  %413 = vmatprep.subr.bf16.mxu0 0
  %414 = vmatpush2.bf16.msra.mxu0 0
  %415 = vmatprep.mubr.bf16.mxu0 0
  %416 = vmatmul.mubr.bf16.gmra.mxu0 %v368
  %v417 = vpop.f32.mrf.mxu0
  %v418 = vadd.f32 %v364, %v417
  %v419 = vpop.f32.mrf.mxu0
  %v420 = vadd.f32 %v364, %v419
  %v421 = vpop.f32.mrf.mxu0
  %v422 = vpop.f32.mrf.mxu0
  %423 = vdwg.mxu0
  %424 = vmatprep.subr.bf16.mxu0 0
  %425 = vmatpush1.bf16.msra.mxu0 0
  %426 = vmatprep.subr.bf16.mxu0 0
  %427 = vmatpush1.bf16.msra.mxu0 0
  %428 = vmatprep.subr.bf16.mxu0 0
  %429 = vmatpush1.bf16.msra.mxu0 0
  %430 = vmatprep.subr.bf16.mxu0 0
  %431 = vmatpush1.bf16.msra.mxu0 0
  %432 = vmatprep.subr.bf16.mxu0 0
  %433 = vmatpush1.bf16.msra.mxu0 0
  %434 = vmatprep.subr.bf16.mxu0 0
  %435 = vmatpush1.bf16.msra.mxu0 0
  %436 = vmatprep.subr.bf16.mxu0 0
  %437 = vmatpush1.bf16.msra.mxu0 0
  %438 = vmatprep.subr.bf16.mxu0 %v381
  %439 = vmatpush1.bf16.msra.mxu0 %v378
  %440 = vmatprep.subr.bf16.mxu0 0
  %441 = vmatpush2.bf16.msra.mxu0 0
  %442 = vmatprep.subr.bf16.mxu0 0
  %443 = vmatpush2.bf16.msra.mxu0 0
  %444 = vmatprep.subr.bf16.mxu0 0
  %445 = vmatpush2.bf16.msra.mxu0 0
  %446 = vmatprep.subr.bf16.mxu0 0
  %447 = vmatpush2.bf16.msra.mxu0 0
  %448 = vmatprep.subr.bf16.mxu0 0
  %449 = vmatpush2.bf16.msra.mxu0 0
  %450 = vmatprep.subr.bf16.mxu0 0
  %451 = vmatpush2.bf16.msra.mxu0 0
  %452 = vmatprep.subr.bf16.mxu0 0
  %453 = vmatpush2.bf16.msra.mxu0 0
  %454 = vmatprep.subr.bf16.mxu0 0
  %455 = vmatpush2.bf16.msra.mxu0 0
  %456 = vmatprep.mubr.bf16.mxu0 0
  %457 = vmatmul.mubr.bf16.gmra.mxu0 %v368
  %v458 = vpop.f32.mrf.mxu0
  %v459 = vadd.f32 %v364, %v458
  %v460 = vpop.f32.mrf.mxu0
  %v461 = vadd.f32 %v364, %v460
  %v462 = vpop.f32.mrf.mxu0
  %v463 = vpop.f32.mrf.mxu0
  %464 = vdwg.mxu0
  %v465 = vsub.f32 0.0, %v418
  %v466 = vsub.f32 0.0, %v420
  %v467 = vsub.f32 0.0, %v459
  %v468 = vsub.f32 0.0, %v461
  %v469 = vmul.f32 %v465, 1.442695
  %v470 = vpow.pop %v469
  %v471 = vmul.f32 %v466, 1.442695
  %v472 = vpow.pop %v471
  %v473 = vmul.f32 %v467, 1.442695
  %v474 = vpow.pop %v473
  %v475 = vmul.f32 %v468, 1.442695
  %v476 = vpow.pop %v475
  %v477 = vadd.f32 %v470, 1.0
  %v478 = vadd.f32 %v472, 1.0
  %v479 = vadd.f32 %v474, 1.0
  %v480 = vadd.f32 %v476, 1.0
  %v481 = vrcp.pop %v477
  %v482 = vmul.f32 1.0, %v481
  %v483 = vrcp.pop %v478
  %v484 = vmul.f32 1.0, %v483
  %v485 = vrcp.pop %v479
  %v486 = vmul.f32 1.0, %v485
  %v487 = vrcp.pop %v480
  %v488 = vmul.f32 1.0, %v487
  %v489 = vmul.f32 %v418, %v482
  %v490 = vmul.f32 %v420, %v484
  %v491 = vmul.f32 %v459, %v486
  %v492 = vmul.f32 %v461, %v488
  %493 = vrot.lane.b32.xlu0 %v489, 17
  %v494 = vpop.permute.xlu0 %493
  %495 = vrot.lane.b32.xlu0 %v490, 17
  %v496 = vpop.permute.xlu0 %495
  %497 = vrot.lane.b32.xlu0 %v491, 17
  %v498 = vpop.permute.xlu0 %497
  %499 = vrot.lane.b32.xlu0 %v492, 17
  %v500 = vpop.permute.xlu0 %499
  %v501 = vlaneseq
  %v502 = vand.u32 %v501, 127
  %vm503 = vcmp.lt.s32.totalorder %v502, 17
  %v504 = vsel %vm503, %v498, %v500
  %v505 = vsel %vm503, %v496, %v498
  %v506 = vsel %vm503, %v494, %v496
  %v507 = vsel %vm503, %v500, %v494
  %v508 = vmul.f32 %v507, %v231
  %v509 = vmul.f32 %v506, %v235
  %v510 = vmul.f32 %v505, %v239
  %v511 = vmul.f32 %v504, %v243
  %512 = vrot.lane.b32.xlu0 %v489, 16
  %v513 = vpop.permute.xlu0 %512
  %514 = vrot.lane.b32.xlu0 %v490, 16
  %v515 = vpop.permute.xlu0 %514
  %516 = vrot.lane.b32.xlu0 %v491, 16
  %v517 = vpop.permute.xlu0 %516
  %518 = vrot.lane.b32.xlu0 %v492, 16
  %v519 = vpop.permute.xlu0 %518
  %vm520 = vcmp.lt.s32.totalorder %v502, 16
  %v521 = vsel %vm520, %v517, %v519
  %v522 = vsel %vm520, %v515, %v517
  %v523 = vsel %vm520, %v513, %v515
  %v524 = vsel %vm520, %v519, %v513
  %v525 = vmul.f32 %v524, %v247
  %v526 = vmul.f32 %v523, %v251
  %v527 = vmul.f32 %v522, %v255
  %v528 = vmul.f32 %v521, %v259
  %529 = vrot.lane.b32.xlu0 %v489, 15
  %v530 = vpop.permute.xlu0 %529
  %531 = vrot.lane.b32.xlu0 %v490, 15
  %v532 = vpop.permute.xlu0 %531
  %533 = vrot.lane.b32.xlu0 %v491, 15
  %v534 = vpop.permute.xlu0 %533
  %535 = vrot.lane.b32.xlu0 %v492, 15
  %v536 = vpop.permute.xlu0 %535
  %vm537 = vcmp.lt.s32.totalorder %v502, 15
  %v538 = vsel %vm537, %v534, %v536
  %v539 = vsel %vm537, %v532, %v534
  %v540 = vsel %vm537, %v530, %v532
  %v541 = vsel %vm537, %v536, %v530
  %v542 = vmul.f32 %v541, %v263
  %v543 = vmul.f32 %v540, %v267
  %v544 = vmul.f32 %v539, %v271
  %v545 = vmul.f32 %v538, %v275
  %546 = vrot.lane.b32.xlu0 %v489, 1
  %v547 = vpop.permute.xlu0 %546
  %548 = vrot.lane.b32.xlu0 %v490, 1
  %v549 = vpop.permute.xlu0 %548
  %550 = vrot.lane.b32.xlu0 %v491, 1
  %v551 = vpop.permute.xlu0 %550
  %552 = vrot.lane.b32.xlu0 %v492, 1
  %v553 = vpop.permute.xlu0 %552
  %vm554 = vcmp.lt.s32.totalorder %v502, 1
  %v555 = vsel %vm554, %v551, %v553
  %v556 = vsel %vm554, %v549, %v551
  %v557 = vsel %vm554, %v547, %v549
  %v558 = vsel %vm554, %v553, %v547
  %v559 = vmul.f32 %v558, %v279
  %v560 = vmul.f32 %v557, %v283
  %v561 = vmul.f32 %v556, %v287
  %v562 = vmul.f32 %v555, %v291
  %563 = vrot.lane.b32.xlu0 %v489, 127
  %v564 = vpop.permute.xlu0 %563
  %565 = vrot.lane.b32.xlu0 %v490, 127
  %v566 = vpop.permute.xlu0 %565
  %567 = vrot.lane.b32.xlu0 %v491, 127
  %v568 = vpop.permute.xlu0 %567
  %569 = vrot.lane.b32.xlu0 %v492, 127
  %v570 = vpop.permute.xlu0 %569
  %vm571 = vcmp.lt.s32.totalorder %v502, 127
  %v572 = vsel %vm571, %v568, %v570
  %v573 = vsel %vm571, %v566, %v568
  %v574 = vsel %vm571, %v564, %v566
  %v575 = vsel %vm571, %v570, %v564
  %v576 = vmul.f32 %v574, %v295
  %v577 = vmul.f32 %v573, %v299
  %v578 = vmul.f32 %v572, %v303
  %v579 = vmul.f32 %v575, %v307
  %580 = vrot.lane.b32.xlu0 %v489, 113
  %v581 = vpop.permute.xlu0 %580
  %582 = vrot.lane.b32.xlu0 %v490, 113
  %v583 = vpop.permute.xlu0 %582
  %584 = vrot.lane.b32.xlu0 %v491, 113
  %v585 = vpop.permute.xlu0 %584
  %586 = vrot.lane.b32.xlu0 %v492, 113
  %v587 = vpop.permute.xlu0 %586
  %vm588 = vcmp.lt.s32.totalorder %v502, 113
  %v589 = vsel %vm588, %v585, %v587
  %v590 = vsel %vm588, %v583, %v585
  %v591 = vsel %vm588, %v581, %v583
  %v592 = vsel %vm588, %v587, %v581
  %v593 = vmul.f32 %v591, %v311
  %v594 = vmul.f32 %v590, %v315
  %v595 = vmul.f32 %v589, %v319
  %v596 = vmul.f32 %v592, %v323
  %597 = vrot.lane.b32.xlu0 %v489, 112
  %v598 = vpop.permute.xlu0 %597
  %599 = vrot.lane.b32.xlu0 %v490, 112
  %v600 = vpop.permute.xlu0 %599
  %601 = vrot.lane.b32.xlu0 %v491, 112
  %v602 = vpop.permute.xlu0 %601
  %603 = vrot.lane.b32.xlu0 %v492, 112
  %v604 = vpop.permute.xlu0 %603
  %vm605 = vcmp.lt.s32.totalorder %v502, 112
  %v606 = vsel %vm605, %v602, %v604
  %v607 = vsel %vm605, %v600, %v602
  %v608 = vsel %vm605, %v598, %v600
  %v609 = vsel %vm605, %v604, %v598
  %v610 = vmul.f32 %v608, %v327
  %v611 = vmul.f32 %v607, %v331
  %v612 = vmul.f32 %v606, %v335
  %v613 = vmul.f32 %v609, %v339
  %614 = vrot.lane.b32.xlu0 %v489, 111
  %v615 = vpop.permute.xlu0 %614
  %616 = vrot.lane.b32.xlu0 %v490, 111
  %v617 = vpop.permute.xlu0 %616
  %618 = vrot.lane.b32.xlu0 %v491, 111
  %v619 = vpop.permute.xlu0 %618
  %620 = vrot.lane.b32.xlu0 %v492, 111
  %v621 = vpop.permute.xlu0 %620
  %vm622 = vcmp.lt.s32.totalorder %v502, 111
  %v623 = vsel %vm622, %v619, %v621
  %v624 = vsel %vm622, %v617, %v619
  %v625 = vsel %vm622, %v615, %v617
  %v626 = vsel %vm622, %v621, %v615
  %v627 = vmul.f32 %v625, %v343
  %v628 = vmul.f32 %v624, %v347
  %v629 = vmul.f32 %v623, %v351
  %v630 = vmul.f32 %v626, %v355
  %v631 = vpack.c.bf16 %v525, %v508
  %v632 = vpack.c.bf16 %v526, %v509
  %v633 = vpack.c.bf16 %v527, %v510
  %v634 = vpack.c.bf16 %v528, %v511
  %v635 = vpack.c.bf16 %v559, %v542
  %v636 = vpack.c.bf16 %v560, %v543
  %v637 = vpack.c.bf16 %v561, %v544
  %v638 = vpack.c.bf16 %v562, %v545
  %v639 = vpack.c.bf16 %v576, %v489
  %v640 = vpack.c.bf16 %v577, %v490
  %v641 = vpack.c.bf16 %v578, %v491
  %v642 = vpack.c.bf16 %v579, %v492
  %v643 = vpack.c.bf16 %v610, %v593
  %v644 = vpack.c.bf16 %v611, %v594
  %v645 = vpack.c.bf16 %v612, %v595
  %v646 = vpack.c.bf16 %v613, %v596
  %v647 = vpack.c.bf16 %v627, %v627
  %v648 = vpack.c.bf16 %v628, %v628
  %v649 = vpack.c.bf16 %v629, %v629
  %v650 = vpack.c.bf16 %v630, %v630
  %v651 = vld [vmem:[%s7] sm:$0xff]
  %653 = vset.pattern.permute.xlu0 0
  %654 = vperm.xlu0 %653, %v651
  %v655 = vpop.permute.xlu0 %654
  %vm657 = vcmask 588800
  %v659 = vsel %vm657, %v65, 0
  %v662 = vsel %vm370, %v647, 0
  %v665 = vsel %vm370, %v648, 0
  %v668 = vsel %vm370, %v649, 0
  %v671 = vsel %vm370, %v650, 0
  %673 = vmatprep.subr.bf16.mxu0 0
  %674 = vmatpush1.bf16.msra.mxu0 0
  %675 = vmatprep.subr.bf16.mxu0 0
  %676 = vmatpush1.bf16.msra.mxu0 0
  %677 = vmatprep.subr.bf16.mxu0 0
  %678 = vmatpush1.bf16.msra.mxu0 0
  %679 = vmatprep.subr.bf16.mxu0 %v665
  %680 = vmatpush1.bf16.msra.mxu0 %v662
  %681 = vmatprep.subr.bf16.mxu0 %v644
  %682 = vmatpush1.bf16.msra.mxu0 %v643
  %683 = vmatprep.subr.bf16.mxu0 %v640
  %684 = vmatpush1.bf16.msra.mxu0 %v639
  %685 = vmatprep.subr.bf16.mxu0 %v636
  %686 = vmatpush1.bf16.msra.mxu0 %v635
  %687 = vmatprep.subr.bf16.mxu0 %v632
  %688 = vmatpush1.bf16.msra.mxu0 %v631
  %689 = vmatprep.subr.bf16.mxu0 0
  %690 = vmatpush2.bf16.msra.mxu0 0
  %691 = vmatprep.subr.bf16.mxu0 0
  %692 = vmatpush2.bf16.msra.mxu0 0
  %693 = vmatprep.subr.bf16.mxu0 0
  %694 = vmatpush2.bf16.msra.mxu0 0
  %695 = vmatprep.subr.bf16.mxu0 0
  %696 = vmatpush2.bf16.msra.mxu0 0
  %697 = vmatprep.subr.bf16.mxu0 0
  %698 = vmatpush2.bf16.msra.mxu0 0
  %699 = vmatprep.subr.bf16.mxu0 0
  %700 = vmatpush2.bf16.msra.mxu0 0
  %701 = vmatprep.subr.bf16.mxu0 0
  %702 = vmatpush2.bf16.msra.mxu0 0
  %703 = vmatprep.subr.bf16.mxu0 0
  %704 = vmatpush2.bf16.msra.mxu0 0
  %705 = vmatprep.mubr.bf16.mxu0 0
  %706 = vmatmul.mubr.bf16.gmra.mxu0 %v659
  %v707 = vpop.f32.mrf.mxu0
  %v708 = vadd.f32 %v655, %v707
  %v709 = vpop.f32.mrf.mxu0
  %v710 = vadd.f32 %v655, %v709
  %v711 = vpop.f32.mrf.mxu0
  %v712 = vpop.f32.mrf.mxu0
  %713 = vdwg.mxu0
  %714 = vmatprep.subr.bf16.mxu0 0
  %715 = vmatpush1.bf16.msra.mxu0 0
  %716 = vmatprep.subr.bf16.mxu0 0
  %717 = vmatpush1.bf16.msra.mxu0 0
  %718 = vmatprep.subr.bf16.mxu0 0
  %719 = vmatpush1.bf16.msra.mxu0 0
  %720 = vmatprep.subr.bf16.mxu0 %v671
  %721 = vmatpush1.bf16.msra.mxu0 %v668
  %722 = vmatprep.subr.bf16.mxu0 %v646
  %723 = vmatpush1.bf16.msra.mxu0 %v645
  %724 = vmatprep.subr.bf16.mxu0 %v642
  %725 = vmatpush1.bf16.msra.mxu0 %v641
  %726 = vmatprep.subr.bf16.mxu0 %v638
  %727 = vmatpush1.bf16.msra.mxu0 %v637
  %728 = vmatprep.subr.bf16.mxu0 %v634
  %729 = vmatpush1.bf16.msra.mxu0 %v633
  %730 = vmatprep.subr.bf16.mxu0 0
  %731 = vmatpush2.bf16.msra.mxu0 0
  %732 = vmatprep.subr.bf16.mxu0 0
  %733 = vmatpush2.bf16.msra.mxu0 0
  %734 = vmatprep.subr.bf16.mxu0 0
  %735 = vmatpush2.bf16.msra.mxu0 0
  %736 = vmatprep.subr.bf16.mxu0 0
  %737 = vmatpush2.bf16.msra.mxu0 0
  %738 = vmatprep.subr.bf16.mxu0 0
  %739 = vmatpush2.bf16.msra.mxu0 0
  %740 = vmatprep.subr.bf16.mxu0 0
  %741 = vmatpush2.bf16.msra.mxu0 0
  %742 = vmatprep.subr.bf16.mxu0 0
  %743 = vmatpush2.bf16.msra.mxu0 0
  %744 = vmatprep.subr.bf16.mxu0 0
  %745 = vmatpush2.bf16.msra.mxu0 0
  %746 = vmatprep.mubr.bf16.mxu0 0
  %747 = vmatmul.mubr.bf16.gmra.mxu0 %v659
  %v748 = vpop.f32.mrf.mxu0
  %v749 = vadd.f32 %v655, %v748
  %v750 = vpop.f32.mrf.mxu0
  %v751 = vadd.f32 %v655, %v750
  %v752 = vpop.f32.mrf.mxu0
  %v753 = vpop.f32.mrf.mxu0
  %754 = vdwg.mxu0
  %v755 = vsub.f32 0.0, %v708
  %v756 = vsub.f32 0.0, %v710
  %v757 = vsub.f32 0.0, %v749
  %v758 = vsub.f32 0.0, %v751
  %v759 = vmul.f32 %v755, 1.442695
  %v760 = vpow.pop %v759
  %v761 = vmul.f32 %v756, 1.442695
  %v762 = vpow.pop %v761
  %v763 = vmul.f32 %v757, 1.442695
  %v764 = vpow.pop %v763
  %v765 = vmul.f32 %v758, 1.442695
  %v766 = vpow.pop %v765
  %v767 = vadd.f32 %v760, 1.0
  %v768 = vadd.f32 %v762, 1.0
  %v769 = vadd.f32 %v764, 1.0
  %v770 = vadd.f32 %v766, 1.0
  %v771 = vrcp.pop %v767
  %v772 = vmul.f32 1.0, %v771
  %v773 = vrcp.pop %v768
  %v774 = vmul.f32 1.0, %v773
  %v775 = vrcp.pop %v769
  %v776 = vmul.f32 1.0, %v775
  %v777 = vrcp.pop %v770
  %v778 = vmul.f32 1.0, %v777
  %v779 = vmul.f32 %v708, %v772
  %v780 = vmul.f32 %v710, %v774
  %v781 = vmul.f32 %v749, %v776
  %v782 = vmul.f32 %v751, %v778
  %v783 = vadd.f32 %v220, %v779
  %v784 = vadd.f32 %v221, %v780
  %v785 = vadd.f32 %v222, %v781
  %v786 = vadd.f32 %v223, %v782
  %v787 = vpack.c.bf16 %v783, %v783
  %v788 = vpack.c.bf16 %v784, %v784
  %v789 = vpack.c.bf16 %v785, %v785
  %v790 = vpack.c.bf16 %v786, %v786
  %s791 = scalar_lea.vmem %s5, 8
  %v792 = vld [vmem:[%s791] sm:$0xff]
  %794 = vset.pattern.permute.xlu0 0
  %795 = vperm.xlu0 %794, %v792
  %v796 = vpop.permute.xlu0 %795
  %v799 = vsel %vm366, %v62, 0
  %v802 = vsel %vm370, %v787, 0
  %v805 = vsel %vm370, %v788, 0
  %v808 = vsel %vm370, %v789, 0
  %v811 = vsel %vm370, %v790, 0
  %813 = vmatprep.subr.bf16.mxu0 0
  %814 = vmatpush1.bf16.msra.mxu0 0
  %815 = vmatprep.subr.bf16.mxu0 0
  %816 = vmatpush1.bf16.msra.mxu0 0
  %817 = vmatprep.subr.bf16.mxu0 0
  %818 = vmatpush1.bf16.msra.mxu0 0
  %819 = vmatprep.subr.bf16.mxu0 0
  %820 = vmatpush1.bf16.msra.mxu0 0
  %821 = vmatprep.subr.bf16.mxu0 0
  %822 = vmatpush1.bf16.msra.mxu0 0
  %823 = vmatprep.subr.bf16.mxu0 0
  %824 = vmatpush1.bf16.msra.mxu0 0
  %825 = vmatprep.subr.bf16.mxu0 0
  %826 = vmatpush1.bf16.msra.mxu0 0
  %827 = vmatprep.subr.bf16.mxu0 %v805
  %828 = vmatpush1.bf16.msra.mxu0 %v802
  %829 = vmatprep.subr.bf16.mxu0 0
  %830 = vmatpush2.bf16.msra.mxu0 0
  %831 = vmatprep.subr.bf16.mxu0 0
  %832 = vmatpush2.bf16.msra.mxu0 0
  %833 = vmatprep.subr.bf16.mxu0 0
  %834 = vmatpush2.bf16.msra.mxu0 0
  %835 = vmatprep.subr.bf16.mxu0 0
  %836 = vmatpush2.bf16.msra.mxu0 0
  %837 = vmatprep.subr.bf16.mxu0 0
  %838 = vmatpush2.bf16.msra.mxu0 0
  %839 = vmatprep.subr.bf16.mxu0 0
  %840 = vmatpush2.bf16.msra.mxu0 0
  %841 = vmatprep.subr.bf16.mxu0 0
  %842 = vmatpush2.bf16.msra.mxu0 0
  %843 = vmatprep.subr.bf16.mxu0 0
  %844 = vmatpush2.bf16.msra.mxu0 0
  %845 = vmatprep.mubr.bf16.mxu0 0
  %846 = vmatmul.mubr.bf16.gmra.mxu0 %v799
  %v847 = vpop.f32.mrf.mxu0
  %v848 = vadd.f32 %v796, %v847
  %v849 = vpop.f32.mrf.mxu0
  %v850 = vadd.f32 %v796, %v849
  %v851 = vpop.f32.mrf.mxu0
  %v852 = vpop.f32.mrf.mxu0
  %853 = vdwg.mxu0
  %854 = vmatprep.subr.bf16.mxu0 0
  %855 = vmatpush1.bf16.msra.mxu0 0
  %856 = vmatprep.subr.bf16.mxu0 0
  %857 = vmatpush1.bf16.msra.mxu0 0
  %858 = vmatprep.subr.bf16.mxu0 0
  %859 = vmatpush1.bf16.msra.mxu0 0
  %860 = vmatprep.subr.bf16.mxu0 0
  %861 = vmatpush1.bf16.msra.mxu0 0
  %862 = vmatprep.subr.bf16.mxu0 0
  %863 = vmatpush1.bf16.msra.mxu0 0
  %864 = vmatprep.subr.bf16.mxu0 0
  %865 = vmatpush1.bf16.msra.mxu0 0
  %866 = vmatprep.subr.bf16.mxu0 0
  %867 = vmatpush1.bf16.msra.mxu0 0
  %868 = vmatprep.subr.bf16.mxu0 %v811
  %869 = vmatpush1.bf16.msra.mxu0 %v808
  %870 = vmatprep.subr.bf16.mxu0 0
  %871 = vmatpush2.bf16.msra.mxu0 0
  %872 = vmatprep.subr.bf16.mxu0 0
  %873 = vmatpush2.bf16.msra.mxu0 0
  %874 = vmatprep.subr.bf16.mxu0 0
  %875 = vmatpush2.bf16.msra.mxu0 0
  %876 = vmatprep.subr.bf16.mxu0 0
  %877 = vmatpush2.bf16.msra.mxu0 0
  %878 = vmatprep.subr.bf16.mxu0 0
  %879 = vmatpush2.bf16.msra.mxu0 0
  %880 = vmatprep.subr.bf16.mxu0 0
  %881 = vmatpush2.bf16.msra.mxu0 0
  %882 = vmatprep.subr.bf16.mxu0 0
  %883 = vmatpush2.bf16.msra.mxu0 0
  %884 = vmatprep.subr.bf16.mxu0 0
  %885 = vmatpush2.bf16.msra.mxu0 0
  %886 = vmatprep.mubr.bf16.mxu0 0
  %887 = vmatmul.mubr.bf16.gmra.mxu0 %v799
  %v888 = vpop.f32.mrf.mxu0
  %v889 = vadd.f32 %v796, %v888
  %v890 = vpop.f32.mrf.mxu0
  %v891 = vadd.f32 %v796, %v890
  %v892 = vpop.f32.mrf.mxu0
  %v893 = vpop.f32.mrf.mxu0
  %894 = vdwg.mxu0
  %v895 = vsub.f32 0.0, %v848
  %v896 = vsub.f32 0.0, %v850
  %v897 = vsub.f32 0.0, %v889
  %v898 = vsub.f32 0.0, %v891
  %v899 = vmul.f32 %v895, 1.442695
  %v900 = vpow.pop %v899
  %v901 = vmul.f32 %v896, 1.442695
  %v902 = vpow.pop %v901
  %v903 = vmul.f32 %v897, 1.442695
  %v904 = vpow.pop %v903
  %v905 = vmul.f32 %v898, 1.442695
  %v906 = vpow.pop %v905
  %v907 = vadd.f32 %v900, 1.0
  %v908 = vadd.f32 %v902, 1.0
  %v909 = vadd.f32 %v904, 1.0
  %v910 = vadd.f32 %v906, 1.0
  %v911 = vrcp.pop %v907
  %v912 = vmul.f32 1.0, %v911
  %v913 = vrcp.pop %v908
  %v914 = vmul.f32 1.0, %v913
  %v915 = vrcp.pop %v909
  %v916 = vmul.f32 1.0, %v915
  %v917 = vrcp.pop %v910
  %v918 = vmul.f32 1.0, %v917
  %v919 = vmul.f32 %v848, %v912
  %v920 = vmul.f32 %v850, %v914
  %v921 = vmul.f32 %v889, %v916
  %v922 = vmul.f32 %v891, %v918
  %923 = vrot.lane.b32.xlu0 %v919, 17
  %v924 = vpop.permute.xlu0 %923
  %925 = vrot.lane.b32.xlu0 %v920, 17
  %v926 = vpop.permute.xlu0 %925
  %927 = vrot.lane.b32.xlu0 %v921, 17
  %v928 = vpop.permute.xlu0 %927
  %929 = vrot.lane.b32.xlu0 %v922, 17
  %v930 = vpop.permute.xlu0 %929
  %v931 = vsel %vm503, %v928, %v930
  %v932 = vsel %vm503, %v926, %v928
  %v933 = vsel %vm503, %v924, %v926
  %v934 = vsel %vm503, %v930, %v924
  %v935 = vmul.f32 %v934, %v231
  %v936 = vmul.f32 %v933, %v235
  %v937 = vmul.f32 %v932, %v239
  %v938 = vmul.f32 %v931, %v243
  %939 = vrot.lane.b32.xlu0 %v919, 16
  %v940 = vpop.permute.xlu0 %939
  %941 = vrot.lane.b32.xlu0 %v920, 16
  %v942 = vpop.permute.xlu0 %941
  %943 = vrot.lane.b32.xlu0 %v921, 16
  %v944 = vpop.permute.xlu0 %943
  %945 = vrot.lane.b32.xlu0 %v922, 16
  %v946 = vpop.permute.xlu0 %945
  %v947 = vsel %vm520, %v944, %v946
  %v948 = vsel %vm520, %v942, %v944
  %v949 = vsel %vm520, %v940, %v942
  %v950 = vsel %vm520, %v946, %v940
  %v951 = vmul.f32 %v950, %v247
  %v952 = vmul.f32 %v949, %v251
  %v953 = vmul.f32 %v948, %v255
  %v954 = vmul.f32 %v947, %v259
  %955 = vrot.lane.b32.xlu0 %v919, 15
  %v956 = vpop.permute.xlu0 %955
  %957 = vrot.lane.b32.xlu0 %v920, 15
  %v958 = vpop.permute.xlu0 %957
  %959 = vrot.lane.b32.xlu0 %v921, 15
  %v960 = vpop.permute.xlu0 %959
  %961 = vrot.lane.b32.xlu0 %v922, 15
  %v962 = vpop.permute.xlu0 %961
  %v963 = vsel %vm537, %v960, %v962
  %v964 = vsel %vm537, %v958, %v960
  %v965 = vsel %vm537, %v956, %v958
  %v966 = vsel %vm537, %v962, %v956
  %v967 = vmul.f32 %v966, %v263
  %v968 = vmul.f32 %v965, %v267
  %v969 = vmul.f32 %v964, %v271
  %v970 = vmul.f32 %v963, %v275
  %971 = vrot.lane.b32.xlu0 %v919, 1
  %v972 = vpop.permute.xlu0 %971
  %973 = vrot.lane.b32.xlu0 %v920, 1
  %v974 = vpop.permute.xlu0 %973
  %975 = vrot.lane.b32.xlu0 %v921, 1
  %v976 = vpop.permute.xlu0 %975
  %977 = vrot.lane.b32.xlu0 %v922, 1
  %v978 = vpop.permute.xlu0 %977
  %v979 = vsel %vm554, %v976, %v978
  %v980 = vsel %vm554, %v974, %v976
  %v981 = vsel %vm554, %v972, %v974
  %v982 = vsel %vm554, %v978, %v972
  %v983 = vmul.f32 %v982, %v279
  %v984 = vmul.f32 %v981, %v283
  %v985 = vmul.f32 %v980, %v287
  %v986 = vmul.f32 %v979, %v291
  %987 = vrot.lane.b32.xlu0 %v919, 127
  %v988 = vpop.permute.xlu0 %987
  %989 = vrot.lane.b32.xlu0 %v920, 127
  %v990 = vpop.permute.xlu0 %989
  %991 = vrot.lane.b32.xlu0 %v921, 127
  %v992 = vpop.permute.xlu0 %991
  %993 = vrot.lane.b32.xlu0 %v922, 127
  %v994 = vpop.permute.xlu0 %993
  %v995 = vsel %vm571, %v992, %v994
  %v996 = vsel %vm571, %v990, %v992
  %v997 = vsel %vm571, %v988, %v990
  %v998 = vsel %vm571, %v994, %v988
  %v999 = vmul.f32 %v997, %v295
  %v1000 = vmul.f32 %v996, %v299
  %v1001 = vmul.f32 %v995, %v303
  %v1002 = vmul.f32 %v998, %v307
  %1003 = vrot.lane.b32.xlu0 %v919, 113
  %v1004 = vpop.permute.xlu0 %1003
  %1005 = vrot.lane.b32.xlu0 %v920, 113
  %v1006 = vpop.permute.xlu0 %1005
  %1007 = vrot.lane.b32.xlu0 %v921, 113
  %v1008 = vpop.permute.xlu0 %1007
  %1009 = vrot.lane.b32.xlu0 %v922, 113
  %v1010 = vpop.permute.xlu0 %1009
  %v1011 = vsel %vm588, %v1008, %v1010
  %v1012 = vsel %vm588, %v1006, %v1008
  %v1013 = vsel %vm588, %v1004, %v1006
  %v1014 = vsel %vm588, %v1010, %v1004
  %v1015 = vmul.f32 %v1013, %v311
  %v1016 = vmul.f32 %v1012, %v315
  %v1017 = vmul.f32 %v1011, %v319
  %v1018 = vmul.f32 %v1014, %v323
  %1019 = vrot.lane.b32.xlu0 %v919, 112
  %v1020 = vpop.permute.xlu0 %1019
  %1021 = vrot.lane.b32.xlu0 %v920, 112
  %v1022 = vpop.permute.xlu0 %1021
  %1023 = vrot.lane.b32.xlu0 %v921, 112
  %v1024 = vpop.permute.xlu0 %1023
  %1025 = vrot.lane.b32.xlu0 %v922, 112
  %v1026 = vpop.permute.xlu0 %1025
  %v1027 = vsel %vm605, %v1024, %v1026
  %v1028 = vsel %vm605, %v1022, %v1024
  %v1029 = vsel %vm605, %v1020, %v1022
  %v1030 = vsel %vm605, %v1026, %v1020
  %v1031 = vmul.f32 %v1029, %v327
  %v1032 = vmul.f32 %v1028, %v331
  %v1033 = vmul.f32 %v1027, %v335
  %v1034 = vmul.f32 %v1030, %v339
  %1035 = vrot.lane.b32.xlu0 %v919, 111
  %v1036 = vpop.permute.xlu0 %1035
  %1037 = vrot.lane.b32.xlu0 %v920, 111
  %v1038 = vpop.permute.xlu0 %1037
  %1039 = vrot.lane.b32.xlu0 %v921, 111
  %v1040 = vpop.permute.xlu0 %1039
  %1041 = vrot.lane.b32.xlu0 %v922, 111
  %v1042 = vpop.permute.xlu0 %1041
  %v1043 = vsel %vm622, %v1040, %v1042
  %v1044 = vsel %vm622, %v1038, %v1040
  %v1045 = vsel %vm622, %v1036, %v1038
  %v1046 = vsel %vm622, %v1042, %v1036
  %v1047 = vmul.f32 %v1045, %v343
  %v1048 = vmul.f32 %v1044, %v347
  %v1049 = vmul.f32 %v1043, %v351
  %v1050 = vmul.f32 %v1046, %v355
  %v1051 = vpack.c.bf16 %v951, %v935
  %v1052 = vpack.c.bf16 %v952, %v936
  %v1053 = vpack.c.bf16 %v953, %v937
  %v1054 = vpack.c.bf16 %v954, %v938
  %v1055 = vpack.c.bf16 %v983, %v967
  %v1056 = vpack.c.bf16 %v984, %v968
  %v1057 = vpack.c.bf16 %v985, %v969
  %v1058 = vpack.c.bf16 %v986, %v970
  %v1059 = vpack.c.bf16 %v999, %v919
  %v1060 = vpack.c.bf16 %v1000, %v920
  %v1061 = vpack.c.bf16 %v1001, %v921
  %v1062 = vpack.c.bf16 %v1002, %v922
  %v1063 = vpack.c.bf16 %v1031, %v1015
  %v1064 = vpack.c.bf16 %v1032, %v1016
  %v1065 = vpack.c.bf16 %v1033, %v1017
  %v1066 = vpack.c.bf16 %v1034, %v1018
  %v1067 = vpack.c.bf16 %v1047, %v1047
  %v1068 = vpack.c.bf16 %v1048, %v1048
  %v1069 = vpack.c.bf16 %v1049, %v1049
  %v1070 = vpack.c.bf16 %v1050, %v1050
  %s1071 = scalar_lea.vmem %s7, 8
  %v1072 = vld [vmem:[%s1071] sm:$0xff]
  %1074 = vset.pattern.permute.xlu0 0
  %1075 = vperm.xlu0 %1074, %v1072
  %v1076 = vpop.permute.xlu0 %1075
  %v1079 = vsel %vm657, %v66, 0
  %v1082 = vsel %vm370, %v1067, 0
  %v1085 = vsel %vm370, %v1068, 0
  %v1088 = vsel %vm370, %v1069, 0
  %v1091 = vsel %vm370, %v1070, 0
  %1093 = vmatprep.subr.bf16.mxu0 0
  %1094 = vmatpush1.bf16.msra.mxu0 0
  %1095 = vmatprep.subr.bf16.mxu0 0
  %1096 = vmatpush1.bf16.msra.mxu0 0
  %1097 = vmatprep.subr.bf16.mxu0 0
  %1098 = vmatpush1.bf16.msra.mxu0 0
  %1099 = vmatprep.subr.bf16.mxu0 %v1085
  %1100 = vmatpush1.bf16.msra.mxu0 %v1082
  %1101 = vmatprep.subr.bf16.mxu0 %v1064
  %1102 = vmatpush1.bf16.msra.mxu0 %v1063
  %1103 = vmatprep.subr.bf16.mxu0 %v1060
  %1104 = vmatpush1.bf16.msra.mxu0 %v1059
  %1105 = vmatprep.subr.bf16.mxu0 %v1056
  %1106 = vmatpush1.bf16.msra.mxu0 %v1055
  %1107 = vmatprep.subr.bf16.mxu0 %v1052
  %1108 = vmatpush1.bf16.msra.mxu0 %v1051
  %1109 = vmatprep.subr.bf16.mxu0 0
  %1110 = vmatpush2.bf16.msra.mxu0 0
  %1111 = vmatprep.subr.bf16.mxu0 0
  %1112 = vmatpush2.bf16.msra.mxu0 0
  %1113 = vmatprep.subr.bf16.mxu0 0
  %1114 = vmatpush2.bf16.msra.mxu0 0
  %1115 = vmatprep.subr.bf16.mxu0 0
  %1116 = vmatpush2.bf16.msra.mxu0 0
  %1117 = vmatprep.subr.bf16.mxu0 0
  %1118 = vmatpush2.bf16.msra.mxu0 0
  %1119 = vmatprep.subr.bf16.mxu0 0
  %1120 = vmatpush2.bf16.msra.mxu0 0
  %1121 = vmatprep.subr.bf16.mxu0 0
  %1122 = vmatpush2.bf16.msra.mxu0 0
  %1123 = vmatprep.subr.bf16.mxu0 0
  %1124 = vmatpush2.bf16.msra.mxu0 0
  %1125 = vmatprep.mubr.bf16.mxu0 0
  %1126 = vmatmul.mubr.bf16.gmra.mxu0 %v1079
  %v1127 = vpop.f32.mrf.mxu0
  %v1128 = vadd.f32 %v1076, %v1127
  %v1129 = vpop.f32.mrf.mxu0
  %v1130 = vadd.f32 %v1076, %v1129
  %v1131 = vpop.f32.mrf.mxu0
  %v1132 = vpop.f32.mrf.mxu0
  %1133 = vdwg.mxu0
  %1134 = vmatprep.subr.bf16.mxu0 0
  %1135 = vmatpush1.bf16.msra.mxu0 0
  %1136 = vmatprep.subr.bf16.mxu0 0
  %1137 = vmatpush1.bf16.msra.mxu0 0
  %1138 = vmatprep.subr.bf16.mxu0 0
  %1139 = vmatpush1.bf16.msra.mxu0 0
  %1140 = vmatprep.subr.bf16.mxu0 %v1091
  %1141 = vmatpush1.bf16.msra.mxu0 %v1088
  %1142 = vmatprep.subr.bf16.mxu0 %v1066
  %1143 = vmatpush1.bf16.msra.mxu0 %v1065
  %1144 = vmatprep.subr.bf16.mxu0 %v1062
  %1145 = vmatpush1.bf16.msra.mxu0 %v1061
  %1146 = vmatprep.subr.bf16.mxu0 %v1058
  %1147 = vmatpush1.bf16.msra.mxu0 %v1057
  %1148 = vmatprep.subr.bf16.mxu0 %v1054
  %1149 = vmatpush1.bf16.msra.mxu0 %v1053
  %1150 = vmatprep.subr.bf16.mxu0 0
  %1151 = vmatpush2.bf16.msra.mxu0 0
  %1152 = vmatprep.subr.bf16.mxu0 0
  %1153 = vmatpush2.bf16.msra.mxu0 0
  %1154 = vmatprep.subr.bf16.mxu0 0
  %1155 = vmatpush2.bf16.msra.mxu0 0
  %1156 = vmatprep.subr.bf16.mxu0 0
  %1157 = vmatpush2.bf16.msra.mxu0 0
  %1158 = vmatprep.subr.bf16.mxu0 0
  %1159 = vmatpush2.bf16.msra.mxu0 0
  %1160 = vmatprep.subr.bf16.mxu0 0
  %1161 = vmatpush2.bf16.msra.mxu0 0
  %1162 = vmatprep.subr.bf16.mxu0 0
  %1163 = vmatpush2.bf16.msra.mxu0 0
  %1164 = vmatprep.subr.bf16.mxu0 0
  %1165 = vmatpush2.bf16.msra.mxu0 0
  %1166 = vmatprep.mubr.bf16.mxu0 0
  %1167 = vmatmul.mubr.bf16.gmra.mxu0 %v1079
  %v1168 = vpop.f32.mrf.mxu0
  %v1169 = vadd.f32 %v1076, %v1168
  %v1170 = vpop.f32.mrf.mxu0
  %v1171 = vadd.f32 %v1076, %v1170
  %v1172 = vpop.f32.mrf.mxu0
  %v1173 = vpop.f32.mrf.mxu0
  %1174 = vdwg.mxu0
  %v1175 = vsub.f32 0.0, %v1128
  %v1176 = vsub.f32 0.0, %v1130
  %v1177 = vsub.f32 0.0, %v1169
  %v1178 = vsub.f32 0.0, %v1171
  %v1179 = vmul.f32 %v1175, 1.442695
  %v1180 = vpow.pop %v1179
  %v1181 = vmul.f32 %v1176, 1.442695
  %v1182 = vpow.pop %v1181
  %v1183 = vmul.f32 %v1177, 1.442695
  %v1184 = vpow.pop %v1183
  %v1185 = vmul.f32 %v1178, 1.442695
  %v1186 = vpow.pop %v1185
  %v1187 = vadd.f32 %v1180, 1.0
  %v1188 = vadd.f32 %v1182, 1.0
  %v1189 = vadd.f32 %v1184, 1.0
  %v1190 = vadd.f32 %v1186, 1.0
  %v1191 = vrcp.pop %v1187
  %v1192 = vmul.f32 1.0, %v1191
  %v1193 = vrcp.pop %v1188
  %v1194 = vmul.f32 1.0, %v1193
  %v1195 = vrcp.pop %v1189
  %v1196 = vmul.f32 1.0, %v1195
  %v1197 = vrcp.pop %v1190
  %v1198 = vmul.f32 1.0, %v1197
  %v1199 = vmul.f32 %v1128, %v1192
  %v1200 = vmul.f32 %v1130, %v1194
  %v1201 = vmul.f32 %v1169, %v1196
  %v1202 = vmul.f32 %v1171, %v1198
  %v1203 = vadd.f32 %v783, %v1199
  %v1204 = vadd.f32 %v784, %v1200
  %v1205 = vadd.f32 %v785, %v1201
  %v1206 = vadd.f32 %v786, %v1202
  %v1207 = vpack.c.bf16 %v1203, %v1203
  %v1208 = vpack.c.bf16 %v1204, %v1204
  %v1209 = vpack.c.bf16 %v1205, %v1205
  %v1210 = vpack.c.bf16 %v1206, %v1206
  %v1211 = vpack.c.bf16 %v224, %v224
  %v1212 = vpack.c.bf16 %v225, %v225
  %v1213 = vpack.c.bf16 %v226, %v226
  %v1214 = vpack.c.bf16 %v227, %v227
  %1216 = vrot.lane.b32.xlu0 %v69, 120
  %v1217 = vpop.permute.xlu0 %1216
  %v1219 = vsel %vm366, %v1217, 0
  %v1222 = vsel %vm370, %v1211, 0
  %v1225 = vsel %vm370, %v1212, 0
  %v1228 = vsel %vm370, %v1213, 0
  %v1231 = vsel %vm370, %v1214, 0
  %1233 = vmatprep.subr.bf16.mxu0 0
  %1234 = vmatpush1.bf16.msra.mxu0 0
  %1235 = vmatprep.subr.bf16.mxu0 0
  %1236 = vmatpush1.bf16.msra.mxu0 0
  %1237 = vmatprep.subr.bf16.mxu0 0
  %1238 = vmatpush1.bf16.msra.mxu0 0
  %1239 = vmatprep.subr.bf16.mxu0 0
  %1240 = vmatpush1.bf16.msra.mxu0 0
  %1241 = vmatprep.subr.bf16.mxu0 0
  %1242 = vmatpush1.bf16.msra.mxu0 0
  %1243 = vmatprep.subr.bf16.mxu0 0
  %1244 = vmatpush1.bf16.msra.mxu0 0
  %1245 = vmatprep.subr.bf16.mxu0 0
  %1246 = vmatpush1.bf16.msra.mxu0 0
  %1247 = vmatprep.subr.bf16.mxu0 %v1225
  %1248 = vmatpush1.bf16.msra.mxu0 %v1222
  %1249 = vmatprep.subr.bf16.mxu0 0
  %1250 = vmatpush2.bf16.msra.mxu0 0
  %1251 = vmatprep.subr.bf16.mxu0 0
  %1252 = vmatpush2.bf16.msra.mxu0 0
  %1253 = vmatprep.subr.bf16.mxu0 0
  %1254 = vmatpush2.bf16.msra.mxu0 0
  %1255 = vmatprep.subr.bf16.mxu0 0
  %1256 = vmatpush2.bf16.msra.mxu0 0
  %1257 = vmatprep.subr.bf16.mxu0 0
  %1258 = vmatpush2.bf16.msra.mxu0 0
  %1259 = vmatprep.subr.bf16.mxu0 0
  %1260 = vmatpush2.bf16.msra.mxu0 0
  %1261 = vmatprep.subr.bf16.mxu0 0
  %1262 = vmatpush2.bf16.msra.mxu0 0
  %1263 = vmatprep.subr.bf16.mxu0 0
  %1264 = vmatpush2.bf16.msra.mxu0 0
  %1265 = vmatprep.mubr.bf16.mxu0 0
  %1266 = vmatmul.mubr.bf16.gmra.mxu0 %v1219
  %v1267 = vpop.f32.mrf.mxu0
  %v1268 = vadd.f32 0.0, %v1267
  %v1269 = vpop.f32.mrf.mxu0
  %v1270 = vadd.f32 0.0, %v1269
  %v1271 = vpop.f32.mrf.mxu0
  %v1272 = vadd.f32 0.0, %v1271
  %v1273 = vpop.f32.mrf.mxu0
  %v1274 = vadd.f32 0.0, %v1273
  %1275 = vdwg.mxu0
  %1276 = vmatprep.subr.bf16.mxu0 0
  %1277 = vmatpush1.bf16.msra.mxu0 0
  %1278 = vmatprep.subr.bf16.mxu0 0
  %1279 = vmatpush1.bf16.msra.mxu0 0
  %1280 = vmatprep.subr.bf16.mxu0 0
  %1281 = vmatpush1.bf16.msra.mxu0 0
  %1282 = vmatprep.subr.bf16.mxu0 0
  %1283 = vmatpush1.bf16.msra.mxu0 0
  %1284 = vmatprep.subr.bf16.mxu0 0
  %1285 = vmatpush1.bf16.msra.mxu0 0
  %1286 = vmatprep.subr.bf16.mxu0 0
  %1287 = vmatpush1.bf16.msra.mxu0 0
  %1288 = vmatprep.subr.bf16.mxu0 0
  %1289 = vmatpush1.bf16.msra.mxu0 0
  %1290 = vmatprep.subr.bf16.mxu0 %v1231
  %1291 = vmatpush1.bf16.msra.mxu0 %v1228
  %1292 = vmatprep.subr.bf16.mxu0 0
  %1293 = vmatpush2.bf16.msra.mxu0 0
  %1294 = vmatprep.subr.bf16.mxu0 0
  %1295 = vmatpush2.bf16.msra.mxu0 0
  %1296 = vmatprep.subr.bf16.mxu0 0
  %1297 = vmatpush2.bf16.msra.mxu0 0
  %1298 = vmatprep.subr.bf16.mxu0 0
  %1299 = vmatpush2.bf16.msra.mxu0 0
  %1300 = vmatprep.subr.bf16.mxu0 0
  %1301 = vmatpush2.bf16.msra.mxu0 0
  %1302 = vmatprep.subr.bf16.mxu0 0
  %1303 = vmatpush2.bf16.msra.mxu0 0
  %1304 = vmatprep.subr.bf16.mxu0 0
  %1305 = vmatpush2.bf16.msra.mxu0 0
  %1306 = vmatprep.subr.bf16.mxu0 0
  %1307 = vmatpush2.bf16.msra.mxu0 0
  %1308 = vmatprep.mubr.bf16.mxu0 0
  %1309 = vmatmul.mubr.bf16.gmra.mxu0 %v1219
  %v1310 = vpop.f32.mrf.mxu0
  %v1311 = vadd.f32 0.0, %v1310
  %v1312 = vpop.f32.mrf.mxu0
  %v1313 = vadd.f32 0.0, %v1312
  %v1314 = vpop.f32.mrf.mxu0
  %v1315 = vadd.f32 0.0, %v1314
  %v1316 = vpop.f32.mrf.mxu0
  %v1317 = vadd.f32 0.0, %v1316
  %1318 = vdwg.mxu0
  %v1320 = vsel %vm366, %v69, 0
  %v1323 = vsel %vm370, %v1207, 0
  %v1326 = vsel %vm370, %v1208, 0
  %v1329 = vsel %vm370, %v1209, 0
  %v1332 = vsel %vm370, %v1210, 0
  %1334 = vmatprep.subr.bf16.mxu0 0
  %1335 = vmatpush1.bf16.msra.mxu0 0
  %1336 = vmatprep.subr.bf16.mxu0 0
  %1337 = vmatpush1.bf16.msra.mxu0 0
  %1338 = vmatprep.subr.bf16.mxu0 0
  %1339 = vmatpush1.bf16.msra.mxu0 0
  %1340 = vmatprep.subr.bf16.mxu0 0
  %1341 = vmatpush1.bf16.msra.mxu0 0
  %1342 = vmatprep.subr.bf16.mxu0 0
  %1343 = vmatpush1.bf16.msra.mxu0 0
  %1344 = vmatprep.subr.bf16.mxu0 0
  %1345 = vmatpush1.bf16.msra.mxu0 0
  %1346 = vmatprep.subr.bf16.mxu0 0
  %1347 = vmatpush1.bf16.msra.mxu0 0
  %1348 = vmatprep.subr.bf16.mxu0 %v1326
  %1349 = vmatpush1.bf16.msra.mxu0 %v1323
  %1350 = vmatprep.subr.bf16.mxu0 0
  %1351 = vmatpush2.bf16.msra.mxu0 0
  %1352 = vmatprep.subr.bf16.mxu0 0
  %1353 = vmatpush2.bf16.msra.mxu0 0
  %1354 = vmatprep.subr.bf16.mxu0 0
  %1355 = vmatpush2.bf16.msra.mxu0 0
  %1356 = vmatprep.subr.bf16.mxu0 0
  %1357 = vmatpush2.bf16.msra.mxu0 0
  %1358 = vmatprep.subr.bf16.mxu0 0
  %1359 = vmatpush2.bf16.msra.mxu0 0
  %1360 = vmatprep.subr.bf16.mxu0 0
  %1361 = vmatpush2.bf16.msra.mxu0 0
  %1362 = vmatprep.subr.bf16.mxu0 0
  %1363 = vmatpush2.bf16.msra.mxu0 0
  %1364 = vmatprep.subr.bf16.mxu0 0
  %1365 = vmatpush2.bf16.msra.mxu0 0
  %1366 = vmatprep.mubr.bf16.mxu0 0
  %1367 = vmatmul.mubr.bf16.gmra.mxu0 %v1320
  %v1368 = vpop.f32.mrf.mxu0
  %v1369 = vadd.f32 %v1268, %v1368
  %v1370 = vpop.f32.mrf.mxu0
  %v1371 = vadd.f32 %v1270, %v1370
  %v1372 = vpop.f32.mrf.mxu0
  %v1373 = vadd.f32 %v1272, %v1372
  %v1374 = vpop.f32.mrf.mxu0
  %v1375 = vadd.f32 %v1274, %v1374
  %1376 = vdwg.mxu0
  %1377 = vmatprep.subr.bf16.mxu0 0
  %1378 = vmatpush1.bf16.msra.mxu0 0
  %1379 = vmatprep.subr.bf16.mxu0 0
  %1380 = vmatpush1.bf16.msra.mxu0 0
  %1381 = vmatprep.subr.bf16.mxu0 0
  %1382 = vmatpush1.bf16.msra.mxu0 0
  %1383 = vmatprep.subr.bf16.mxu0 0
  %1384 = vmatpush1.bf16.msra.mxu0 0
  %1385 = vmatprep.subr.bf16.mxu0 0
  %1386 = vmatpush1.bf16.msra.mxu0 0
  %1387 = vmatprep.subr.bf16.mxu0 0
  %1388 = vmatpush1.bf16.msra.mxu0 0
  %1389 = vmatprep.subr.bf16.mxu0 0
  %1390 = vmatpush1.bf16.msra.mxu0 0
  %1391 = vmatprep.subr.bf16.mxu0 %v1332
  %1392 = vmatpush1.bf16.msra.mxu0 %v1329
  %1393 = vmatprep.subr.bf16.mxu0 0
  %1394 = vmatpush2.bf16.msra.mxu0 0
  %1395 = vmatprep.subr.bf16.mxu0 0
  %1396 = vmatpush2.bf16.msra.mxu0 0
  %1397 = vmatprep.subr.bf16.mxu0 0
  %1398 = vmatpush2.bf16.msra.mxu0 0
  %1399 = vmatprep.subr.bf16.mxu0 0
  %1400 = vmatpush2.bf16.msra.mxu0 0
  %1401 = vmatprep.subr.bf16.mxu0 0
  %1402 = vmatpush2.bf16.msra.mxu0 0
  %1403 = vmatprep.subr.bf16.mxu0 0
  %1404 = vmatpush2.bf16.msra.mxu0 0
  %1405 = vmatprep.subr.bf16.mxu0 0
  %1406 = vmatpush2.bf16.msra.mxu0 0
  %1407 = vmatprep.subr.bf16.mxu0 0
  %1408 = vmatpush2.bf16.msra.mxu0 0
  %1409 = vmatprep.mubr.bf16.mxu0 0
  %1410 = vmatmul.mubr.bf16.gmra.mxu0 %v1320
  %v1411 = vpop.f32.mrf.mxu0
  %v1412 = vadd.f32 %v1311, %v1411
  %v1413 = vpop.f32.mrf.mxu0
  %v1414 = vadd.f32 %v1313, %v1413
  %v1415 = vpop.f32.mrf.mxu0
  %v1416 = vadd.f32 %v1315, %v1415
  %v1417 = vpop.f32.mrf.mxu0
  %v1418 = vadd.f32 %v1317, %v1417
  %1419 = vdwg.mxu0
  %v1420 = vld [vmem:[%s9] sm:$0xff]
  %v1421 = vld [vmem:[%s9 + $0x8] sm:$0xff]
  %1423 = vset.pattern.permute.xlu0 0
  %1424 = vperm.xlu0 %1423, %v1420
  %v1425 = vpop.permute.xlu0 %1424
  %1428 = vset.pattern.permute.xlu0 0
  %1429 = vperm.xlu0 %1428, %v1421
  %v1430 = vpop.permute.xlu0 %1429
  %v1432 = vadd.f32 %v1369, %v1425
  %v1433 = vadd.f32 %v1371, %v1425
  %v1434 = vadd.f32 %v1412, %v1425
  %v1435 = vadd.f32 %v1414, %v1425
  %v1436 = vadd.f32 %v1373, %v1430
  %v1437 = vadd.f32 %v1375, %v1430
  %v1438 = vadd.f32 %v1416, %v1430
  %v1439 = vadd.f32 %v1418, %v1430
  %v1440 = vsub.f32 0.0, %v1432
  %v1441 = vsub.f32 0.0, %v1433
  %v1442 = vsub.f32 0.0, %v1434
  %v1443 = vsub.f32 0.0, %v1435
  %v1444 = vsub.f32 0.0, %v1436
  %v1445 = vsub.f32 0.0, %v1437
  %v1446 = vsub.f32 0.0, %v1438
  %v1447 = vsub.f32 0.0, %v1439
  %v1448 = vmul.f32 %v1440, 1.442695
  %v1449 = vpow.pop %v1448
  %v1450 = vmul.f32 %v1441, 1.442695
  %v1451 = vpow.pop %v1450
  %v1452 = vmul.f32 %v1442, 1.442695
  %v1453 = vpow.pop %v1452
  %v1454 = vmul.f32 %v1443, 1.442695
  %v1455 = vpow.pop %v1454
  %v1456 = vmul.f32 %v1444, 1.442695
  %v1457 = vpow.pop %v1456
  %v1458 = vmul.f32 %v1445, 1.442695
  %v1459 = vpow.pop %v1458
  %v1460 = vmul.f32 %v1446, 1.442695
  %v1461 = vpow.pop %v1460
  %v1462 = vmul.f32 %v1447, 1.442695
  %v1463 = vpow.pop %v1462
  %v1464 = vadd.f32 %v1449, 1.0
  %v1465 = vadd.f32 %v1451, 1.0
  %v1466 = vadd.f32 %v1453, 1.0
  %v1467 = vadd.f32 %v1455, 1.0
  %v1468 = vadd.f32 %v1457, 1.0
  %v1469 = vadd.f32 %v1459, 1.0
  %v1470 = vadd.f32 %v1461, 1.0
  %v1471 = vadd.f32 %v1463, 1.0
  %v1472 = vrcp.pop %v1464
  %v1473 = vmul.f32 1.0, %v1472
  %v1474 = vrcp.pop %v1465
  %v1475 = vmul.f32 1.0, %v1474
  %v1476 = vrcp.pop %v1466
  %v1477 = vmul.f32 1.0, %v1476
  %v1478 = vrcp.pop %v1467
  %v1479 = vmul.f32 1.0, %v1478
  %v1480 = vrcp.pop %v1468
  %v1481 = vmul.f32 1.0, %v1480
  %v1482 = vrcp.pop %v1469
  %v1483 = vmul.f32 1.0, %v1482
  %v1484 = vrcp.pop %v1470
  %v1485 = vmul.f32 1.0, %v1484
  %v1486 = vrcp.pop %v1471
  %v1487 = vmul.f32 1.0, %v1486
  %v1488 = vmul.f32 %v1432, %v1473
  %v1489 = vmul.f32 %v1433, %v1475
  %v1490 = vmul.f32 %v1434, %v1477
  %v1491 = vmul.f32 %v1435, %v1479
  %v1492 = vmul.f32 %v1436, %v1481
  %v1493 = vmul.f32 %v1437, %v1483
  %v1494 = vmul.f32 %v1438, %v1485
  %v1495 = vmul.f32 %v1439, %v1487
  %1496 = vst [vmem:[%s10] sm:$0xff] %v1488
  %1497 = vst [vmem:[%s10 + $0x8] sm:$0xff] %v1489
  %1498 = vst [vmem:[%s10 + $0x10] sm:$0xff] %v1490
  %1499 = vst [vmem:[%s10 + $0x18] sm:$0xff] %v1491
  %1500 = vst [vmem:[%s10 + $0x20] sm:$0xff] %v1492
  %1501 = vst [vmem:[%s10 + $0x28] sm:$0xff] %v1493
  %1502 = vst [vmem:[%s10 + $0x30] sm:$0xff] %v1494
  %1503 = vst [vmem:[%s10 + $0x38] sm:$0xff] %v1495
  // Predicated region
  $region42: #{c3block_pallas.1} parent=0 // pred_check
    _
  $region43: #{c3block_pallas.1} parent=0 // pred_check_branch
    %1505 = sbr.rel (0) target = $region45
  $region44: #{c3block_pallas.1} parent=0 // pred_region
    _
  $region45: #{c3block_pallas.1} parent=0 // pred_fallthru
    _
  // Predicated region
  $region46: #{c3block_pallas.1} parent=0 // pred_check
    _
  $region47: #{c3block_pallas.1} parent=0 // pred_check_branch
    %1507 = sbr.rel (0) target = $region49
  $region48: #{c3block_pallas.1} parent=0 // pred_region
    _
  $region49: #{c3block_pallas.1} parent=0 // pred_fallthru
    _

</llo_original>
